<compile_context>
chip_gen: v7x
topology: tpu7x:2x2x1
jax: 0.10.0
libtpu: 0.0.40
codegen_flags: <defaults>
</compile_context>

<pallas_src>
import functools

import jax
import jax.numpy as jnp
import numpy as np
from jax.experimental import pallas as pl
from jax.experimental.pallas import tpu as pltpu


# ----------------------------------------------------------------------------
# helpers
# ----------------------------------------------------------------------------
def _round_up(n, m):
    return ((n + m - 1) // m) * m


def _pad_to(a, shape):
    """Zero-pad array `a` up to `shape` (same rank)."""
    return jnp.pad(a, [(0, s - d) for d, s in zip(a.shape, shape)])


def weight_norm_at_init(v):
    # weight_norm stores g = ||v|| (per output filter) and direction v at wrap
    # time, so the effective weight is exactly v; returning v avoids the
    # (norm * v) / norm 0/0 hazard of the previous reparameterization.
    return v


def _choose_tile_t(T, rfp, cp, requested=None):
    """Time-tile width: multiple of 128, >= halo width rfp."""
    if requested is not None:
        tile = _round_up(max(requested, 128), 128)
    else:
        tile = 512
        # Keep ~10 live f32 copies of the (cp, tile+rfp) activation under
        # ~8 MiB so the per-tile working set stays far below scoped VMEM.
        # TODO(synk): re-derive per generation (v7x: 64 MiB VMEM per TC) via
        #             pltpu.get_tpu_info() instead of a fixed budget.
        while tile > 128 and cp * (tile + rfp) * 4 * 10 > (8 << 20):
            tile -= 128
        tile = min(tile, max(128, _round_up(T, 128)))
    return max(tile, rfp)


# ----------------------------------------------------------------------------
# fused, time-tiled Pallas kernel
# ----------------------------------------------------------------------------
def tcn_kernel(x_halo_ref, x_cur_ref, wconv_ref, bconv_ref, wdown_ref,
               bdown_ref, wlin_ref, blin_ref, logits_ref, feats_ref,
               *, cfgs, rfp):
    """One time tile of the whole TCN (all TemporalBlocks + final Linear).

    Window layout (lane axis = time): [rfp halo columns | tile_t output cols].
    The halo is recomputed and discarded; pltpu.roll wrap-around garbage only
    propagates rightward by (K-1)*d per conv, so it stays inside the first
    sum(2*(K-1)*d) <= rfp columns and never reaches the stored output columns.

    cfgs: static tuple of (K, dilation, w_base, b_base, has_downsample,
    ds_slot) per TemporalBlock.
    """
    tile_t = x_cur_ref.shape[1]
    # Build the window: previous-tile tail (or causal zeros for tile 0) + tile.
    h = jnp.concatenate(
        [x_halo_ref[:, tile_t - rfp:], x_cur_ref[...]], axis=1
    ).astype(jnp.float32)                                   # (Cp, rfp+tile_t)

    def causal_conv(hin, K, d, w_base, b_idx):
        # sum of K accumulating MXU dots on rolled taps (no im2col concat,
        # no causal masks -- see the halo argument above).
        acc = None
        for j in range(K):
            shift = (K - 1 - j) * d
            tap = hin if shift == 0 else pltpu.roll(hin, shift=shift, axis=1)
            p = jnp.dot(wconv_ref[w_base + j], tap.astype(jnp.bfloat16),
                        preferred_element_type=jnp.float32)
            acc = p if acc is None else acc + p
        return acc + bconv_ref[b_idx]                       # (Cp, 1) broadcast

    for (K, d, w_base, b_base, has_ds, ds_slot) in cfgs:    # static unroll
        h1 = jnp.maximum(causal_conv(h, K, d, w_base, b_base), 0.0)
        h2 = jnp.maximum(causal_conv(h1, K, d, w_base + K, b_base + 1), 0.0)
        if has_ds:
            res = (jnp.dot(wdown_ref[ds_slot], h.astype(jnp.bfloat16),
                           preferred_element_type=jnp.float32)
                   + bdown_ref[ds_slot])
        else:
            res = h                       # identity residual: skip the matmul
        h = jnp.maximum(h2 + res, 0.0)

    h_out = h[:, rfp:]                                      # (Cp, tile_t)
    feats_ref[...] = h_out.astype(feats_ref.dtype)
    logits_ref[...] = (jnp.dot(wlin_ref[...], h_out.astype(jnp.bfloat16),
                               preferred_element_type=jnp.float32)
                       + blin_ref[...]).astype(logits_ref.dtype)


# ----------------------------------------------------------------------------
# forward wrapper (matches TemporalConvNet.forward -> (logits, features))
# ----------------------------------------------------------------------------
def tcn_forward(x_nct, params, wl, bl, *, tile_t=None):
    # TODO(synk): only stride=1 supported (the standard causal-TCN config);
    #             dropout(p=0.0) is the identity and is omitted; batch is
    #             assumed 1 (the reference's squeeze(0)); batch>1 would add a
    #             second, "parallel" grid axis.
    assert x_nct.shape[0] == 1, "squeeze(0) in the reference implies batch=1"
    _, c0, T = x_nct.shape
    n_classes, c_last = wl.shape

    # ---- static network geometry -------------------------------------------
    chans = [c0] + [p["w1"].shape[0] for p in params]
    Cp = _round_up(max(chans), 16)          # bf16-friendly channel padding
    NCp = _round_up(n_classes, 16)
    rf = sum(2 * (p["w1"].shape[2] - 1) * p["dilation"] for p in params)
    rfp = _round_up(max(rf, 1), 128)        # halo width, lane aligned
    tile = _choose_tile_t(T, rfp, Cp, tile_t)
    Tp = _round_up(T, tile)
    num_tiles = Tp // tile

    # ---- pack per-layer operands into a few slabs (weights in bf16) --------
    w_taps, b_conv, w_down, b_down, cfgs = [], [], [], [], []
    for p in params:
        K = p["w1"].shape[2]
        w_base, b_base = len(w_taps), len(b_conv)
        for w in (p["w1"], p["w2"]):                 # (Cout, Cin, K) each
            for j in range(K):
                w_taps.append(_pad_to(w[:, :, j], (Cp, Cp)))
        b_conv.append(_pad_to(p["b1"].reshape(-1, 1), (Cp, 1)))
        b_conv.append(_pad_to(p["b2"].reshape(-1, 1), (Cp, 1)))
        has_ds = "wd" in p
        ds_slot = len(w_down) if has_ds else 0
        if has_ds:
            w_down.append(_pad_to(p["wd"], (Cp, Cp)))
            b_down.append(_pad_to(p["bd"].reshape(-1, 1), (Cp, 1)))
        cfgs.append((K, p["dilation"], w_base, b_base, has_ds, ds_slot))

    wconv = jnp.stack(w_taps).astype(jnp.bfloat16)          # (sum 2K, Cp, Cp)
    bconv = jnp.stack(b_conv).astype(jnp.float32)           # (2L, Cp, 1)
    if w_down:
        wdown = jnp.stack(w_down).astype(jnp.bfloat16)
        bdown = jnp.stack(b_down).astype(jnp.float32)
    else:                                                    # dummy, unused
        wdown = jnp.zeros((1, Cp, Cp), jnp.bfloat16)
        bdown = jnp.zeros((1, Cp, 1), jnp.float32)
    wlin_p = _pad_to(wl, (NCp, Cp)).astype(jnp.bfloat16)
    blin_p = _pad_to(bl.reshape(-1, 1), (NCp, 1)).astype(jnp.float32)

    # Channel-padded input, pre-padded on the left with one zero tile (the
    # halo source of tile 0 == causal zero padding) and on the right to Tp.
    # Padded channels / padded tail stay harmless: pad weights and bias rows
    # are zero and garbage never reaches real (c, t<T) output positions.
    x_pad = jnp.pad(x_nct[0].astype(jnp.float32),
                    ((0, Cp - c0), (tile, Tp - T)))          # (Cp, tile + Tp)

    def full_spec(arr):
        n = arr.ndim
        return pl.BlockSpec(arr.shape, lambda i: (0,) * n)

    kern = functools.partial(tcn_kernel, cfgs=tuple(cfgs), rfp=rfp)
    logits_ct, feats_ct = pl.pallas_call(
        kern,
        grid=(num_tiles,),
        in_specs=[
            pl.BlockSpec((Cp, tile), lambda i: (0, i)),       # halo (prev) blk
            pl.BlockSpec((Cp, tile), lambda i: (0, i + 1)),   # current block
            full_spec(wconv), full_spec(bconv),
            full_spec(wdown), full_spec(bdown),
            full_spec(wlin_p), full_spec(blin_p),
        ],
        out_specs=[
            pl.BlockSpec((NCp, tile), lambda i: (0, i)),
            pl.BlockSpec((Cp, tile), lambda i: (0, i)),
        ],
        out_shape=(jax.ShapeDtypeStruct((NCp, Tp), jnp.float32),
                   jax.ShapeDtypeStruct((Cp, Tp), jnp.float32)),
        compiler_params=pltpu.CompilerParams(
            dimension_semantics=("parallel",),   # v7x: 2 TCs split the tiles
            vmem_limit_bytes=48 * 1024 * 1024),  # headroom on v7x's 64 MiB
    )(x_pad, x_pad, wconv, bconv, wdown, bdown, wlin_p, blin_p)

    # permute(0,2,1).squeeze(0) semantics: back to (T, C) / (T, n_classes).
    # TODO(synk): if the consumer can take (C, T), drop these two transposes
    #             (an extra HBM round trip; matters most on v5e).
    return logits_ct[:n_classes, :T].T, feats_ct[:c_last, :T].T


# ----------------------------------------------------------------------------
# parameter construction (deterministic, synthetic, PyTorch layouts)
# ----------------------------------------------------------------------------
def init_tcn_params(key, n_features, n_classes, num_channels_per_level,
                    kernel_size):
    params = []
    for i, out_ch in enumerate(num_channels_per_level):
        in_ch = n_features if i == 0 else num_channels_per_level[i - 1]
        key, k1, k2, k3, k4, k5, k6 = jax.random.split(key, 7)
        # PyTorch Conv1d weight layout (Cout, Cin, K); init N(0, 0.01)
        v1 = 0.01 * jax.random.normal(k1, (out_ch, in_ch, kernel_size))
        v2 = 0.01 * jax.random.normal(k2, (out_ch, out_ch, kernel_size))
        p = dict(w1=weight_norm_at_init(v1),
                 w2=weight_norm_at_init(v2),
                 b1=0.05 * jax.random.normal(k3, (out_ch,)),
                 b2=0.05 * jax.random.normal(k4, (out_ch,)),
                 dilation=2 ** i)
        if in_ch != out_ch:
            p["wd"] = 0.01 * jax.random.normal(k5, (out_ch, in_ch))
            p["bd"] = 0.05 * jax.random.normal(k6, (out_ch,))
        params.append(p)
    key, kl1, kl2 = jax.random.split(key, 3)
    c_last = num_channels_per_level[-1]
    wl = jax.random.normal(kl1, (n_classes, c_last)) / jnp.sqrt(c_last)
    bl = 0.05 * jax.random.normal(kl2, (n_classes,))
    return params, wl, bl


# ----------------------------------------------------------------------------
# pure-JAX f32 reference (numerical sanity check)
# ----------------------------------------------------------------------------
def ref_forward(x_nct, params, wl, bl):
    h = x_nct[0]
    for p in params:
        w1, b1, w2, b2 = p["w1"], p["b1"], p["w2"], p["b2"]
        K = w1.shape[2]
        d = p["dilation"]
        pad = (K - 1) * d
        T = h.shape[1]

        def causal_conv(inp, w, b):
            ip = jnp.pad(inp, ((0, 0), (pad, 0)))
            acc = sum(w[:, :, j] @ ip[:, j * d: j * d + T] for j in range(K))
            return acc + b[:, None]

        h1 = jax.nn.relu(causal_conv(h, w1, b1))
        h2 = jax.nn.relu(causal_conv(h1, w2, b2))
        res = (p["wd"] @ h + p["bd"][:, None]) if "wd" in p else h
        h = jax.nn.relu(h2 + res)
    feats = h.T
    return feats @ wl.T + bl, feats


if __name__ == "__main__":
    # Small shapes consistent with the module: batch=1, n_features=4.
    n_features, n_classes = 4, 6
    num_channels_per_level = [8, 8]
    kernel_size = 3

    key = jax.random.PRNGKey(0)
    key, kp = jax.random.split(key)
    params, wl, bl = init_tcn_params(kp, n_features, n_classes,
                                     num_channels_per_level, kernel_size)

    # case 1: tiny T (single tile); case 2: forced 128-wide tiles so the
    # halo / wrap-garbage multi-tile path is exercised.
    for T, forced_tile in ((16, None), (300, 128)):
        key, kx = jax.random.split(key)
        x = jax.random.normal(kx, (1, n_features, T), dtype=jnp.float32)

        logits, feats = tcn_forward(x, params, wl, bl, tile_t=forced_tile)
        logits = jax.block_until_ready(logits)
        feats = jax.block_until_ready(feats)

        ref_logits, ref_feats = ref_forward(x, params, wl, bl)
        # bf16 matmul inputs (f32 accumulate) -> slightly loosened tolerances.
        np.testing.assert_allclose(np.asarray(feats), np.asarray(ref_feats),
                                   rtol=5e-2, atol=1e-2)
        np.testing.assert_allclose(np.asarray(logits), np.asarray(ref_logits),
                                   rtol=5e-2, atol=1e-2)
        assert logits.shape == (T, n_classes)
        assert feats.shape == (T, num_channels_per_level[-1])

    print("KERNEL_OK")
</pallas_src>

<mosaic_0001>
module attributes {stable_mosaic.version = 11 : i64} {
  func.func @tcn_kernel(%arg0: i32, %arg1: memref<16x128xf32, #tpu.memory_space<vmem>>, %arg2: memref<16x128xf32, #tpu.memory_space<vmem>>, %arg3: memref<12x16x16xbf16, #tpu.memory_space<vmem>>, %arg4: memref<4x16x1xf32, #tpu.memory_space<vmem>>, %arg5: memref<1x16x16xbf16, #tpu.memory_space<vmem>>, %arg6: memref<1x16x1xf32, #tpu.memory_space<vmem>>, %arg7: memref<16x16xbf16, #tpu.memory_space<vmem>>, %arg8: memref<16x1xf32, #tpu.memory_space<vmem>>, %arg9: memref<16x128xf32, #tpu.memory_space<vmem>>, %arg10: memref<16x128xf32, #tpu.memory_space<vmem>>) attributes {dimension_semantics = [#tpu.dimension_semantics<parallel>], iteration_bounds = array<i64: 1>, scalar_prefetch = 0 : i64, scratch_operands = 0 : i64, tpu.core_type = #tpu.core_type<tc>, window_params = [{transform_indices = @transform_0, window_bounds = array<i64: 16, 128>}, {transform_indices = @transform_1, window_bounds = array<i64: 16, 128>}, {pipeline_mode = #tpu.pipeline_mode<synchronous>, transform_indices = @transform_2, window_bounds = array<i64: 12, 16, 16>}, {pipeline_mode = #tpu.pipeline_mode<synchronous>, transform_indices = @transform_3, window_bounds = array<i64: 4, 16, 1>}, {pipeline_mode = #tpu.pipeline_mode<synchronous>, transform_indices = @transform_4, window_bounds = array<i64: 1, 16, 16>}, {pipeline_mode = #tpu.pipeline_mode<synchronous>, transform_indices = @transform_5, window_bounds = array<i64: 1, 16, 1>}, {pipeline_mode = #tpu.pipeline_mode<synchronous>, transform_indices = @transform_6, window_bounds = array<i64: 16, 16>}, {pipeline_mode = #tpu.pipeline_mode<synchronous>, transform_indices = @transform_7, window_bounds = array<i64: 16, 1>}, {transform_indices = @transform_8, window_bounds = array<i64: 16, 128>}, {transform_indices = @transform_9, window_bounds = array<i64: 16, 128>}]} {
    %c0 = arith.constant 0 : index
    %c0_0 = arith.constant 0 : index
    %0 = vector.load %arg1[%c0, %c0_0] : memref<16x128xf32, #tpu.memory_space<vmem>>, vector<16x128xf32>
    %c0_1 = arith.constant 0 : index
    %c0_2 = arith.constant 0 : index
    %1 = vector.load %arg2[%c0_1, %c0_2] : memref<16x128xf32, #tpu.memory_space<vmem>>, vector<16x128xf32>
    %2 = tpu.concatenate %0, %1 in 1 : vector<16x128xf32>, vector<16x128xf32> -> vector<16x256xf32>
    %c2_i32 = arith.constant 2 : i32
    %3 = tpu.dynamic_rotate %2 by %c2_i32 dim 1 : vector<16x256xf32>, i32 -> vector<16x256xf32>
    %c0_3 = arith.constant 0 : index
    %c0_4 = arith.constant 0 : index
    %c0_5 = arith.constant 0 : index
    %4 = vector.load %arg3[%c0_3, %c0_4, %c0_5] : memref<12x16x16xbf16, #tpu.memory_space<vmem>>, vector<1x16x16xbf16>
    %5 = vector.shape_cast %4 : vector<1x16x16xbf16> to vector<16x16xbf16>
    %6 = arith.truncf %3 : vector<16x256xf32> to vector<16x256xbf16>
    %cst = arith.constant dense<0.000000e+00> : vector<16x256xf32>
    %7 = tpu.matmul %5, %6, %cst {dimension_numbers = #tpu.dot_dimension_numbers<[1], [0], [0], [1], [0, 0, 1, 1], [], []>} : vector<16x16xbf16>, vector<16x256xbf16>, vector<16x256xf32> -> vector<16x256xf32>
    %c1_i32 = arith.constant 1 : i32
    %8 = tpu.dynamic_rotate %2 by %c1_i32 dim 1 : vector<16x256xf32>, i32 -> vector<16x256xf32>
    %c1 = arith.constant 1 : index
    %c0_6 = arith.constant 0 : index
    %c0_7 = arith.constant 0 : index
    %9 = vector.load %arg3[%c1, %c0_6, %c0_7] : memref<12x16x16xbf16, #tpu.memory_space<vmem>>, vector<1x16x16xbf16>
    %10 = vector.shape_cast %9 : vector<1x16x16xbf16> to vector<16x16xbf16>
    %11 = arith.truncf %8 : vector<16x256xf32> to vector<16x256xbf16>
    %cst_8 = arith.constant dense<0.000000e+00> : vector<16x256xf32>
    %12 = tpu.matmul %10, %11, %cst_8 {dimension_numbers = #tpu.dot_dimension_numbers<[1], [0], [0], [1], [0, 0, 1, 1], [], []>} : vector<16x16xbf16>, vector<16x256xbf16>, vector<16x256xf32> -> vector<16x256xf32>
    %13 = arith.addf %7, %12 : vector<16x256xf32>
    %c2 = arith.constant 2 : index
    %c0_9 = arith.constant 0 : index
    %c0_10 = arith.constant 0 : index
    %14 = vector.load %arg3[%c2, %c0_9, %c0_10] : memref<12x16x16xbf16, #tpu.memory_space<vmem>>, vector<1x16x16xbf16>
    %15 = vector.shape_cast %14 : vector<1x16x16xbf16> to vector<16x16xbf16>
    %16 = arith.truncf %2 : vector<16x256xf32> to vector<16x256xbf16>
    %cst_11 = arith.constant dense<0.000000e+00> : vector<16x256xf32>
    %17 = tpu.matmul %15, %16, %cst_11 {dimension_numbers = #tpu.dot_dimension_numbers<[1], [0], [0], [1], [0, 0, 1, 1], [], []>} : vector<16x16xbf16>, vector<16x256xbf16>, vector<16x256xf32> -> vector<16x256xf32>
    %18 = arith.addf %13, %17 : vector<16x256xf32>
    %c0_12 = arith.constant 0 : index
    %c0_13 = arith.constant 0 : index
    %c0_14 = arith.constant 0 : index
    %19 = vector.load %arg4[%c0_12, %c0_13, %c0_14] : memref<4x16x1xf32, #tpu.memory_space<vmem>>, vector<1x16x1xf32>
    %20 = vector.shape_cast %19 : vector<1x16x1xf32> to vector<16x1xf32>
    %21 = vector.broadcast %20 : vector<16x1xf32> to vector<16x256xf32>
    %22 = arith.addf %18, %21 : vector<16x256xf32>
    %cst_15 = arith.constant 0.000000e+00 : f32
    %23 = vector.broadcast %cst_15 : f32 to vector<16x256xf32>
    %24 = arith.maximumf %22, %23 : vector<16x256xf32>
    %c2_i32_16 = arith.constant 2 : i32
    %25 = tpu.dynamic_rotate %24 by %c2_i32_16 dim 1 : vector<16x256xf32>, i32 -> vector<16x256xf32>
    %c3 = arith.constant 3 : index
    %c0_17 = arith.constant 0 : index
    %c0_18 = arith.constant 0 : index
    %26 = vector.load %arg3[%c3, %c0_17, %c0_18] : memref<12x16x16xbf16, #tpu.memory_space<vmem>>, vector<1x16x16xbf16>
    %27 = vector.shape_cast %26 : vector<1x16x16xbf16> to vector<16x16xbf16>
    %28 = arith.truncf %25 : vector<16x256xf32> to vector<16x256xbf16>
    %cst_19 = arith.constant dense<0.000000e+00> : vector<16x256xf32>
    %29 = tpu.matmul %27, %28, %cst_19 {dimension_numbers = #tpu.dot_dimension_numbers<[1], [0], [0], [1], [0, 0, 1, 1], [], []>} : vector<16x16xbf16>, vector<16x256xbf16>, vector<16x256xf32> -> vector<16x256xf32>
    %c1_i32_20 = arith.constant 1 : i32
    %30 = tpu.dynamic_rotate %24 by %c1_i32_20 dim 1 : vector<16x256xf32>, i32 -> vector<16x256xf32>
    %c4 = arith.constant 4 : index
    %c0_21 = arith.constant 0 : index
    %c0_22 = arith.constant 0 : index
    %31 = vector.load %arg3[%c4, %c0_21, %c0_22] : memref<12x16x16xbf16, #tpu.memory_space<vmem>>, vector<1x16x16xbf16>
    %32 = vector.shape_cast %31 : vector<1x16x16xbf16> to vector<16x16xbf16>
    %33 = arith.truncf %30 : vector<16x256xf32> to vector<16x256xbf16>
    %cst_23 = arith.constant dense<0.000000e+00> : vector<16x256xf32>
    %34 = tpu.matmul %32, %33, %cst_23 {dimension_numbers = #tpu.dot_dimension_numbers<[1], [0], [0], [1], [0, 0, 1, 1], [], []>} : vector<16x16xbf16>, vector<16x256xbf16>, vector<16x256xf32> -> vector<16x256xf32>
    %35 = arith.addf %29, %34 : vector<16x256xf32>
    %c5 = arith.constant 5 : index
    %c0_24 = arith.constant 0 : index
    %c0_25 = arith.constant 0 : index
    %36 = vector.load %arg3[%c5, %c0_24, %c0_25] : memref<12x16x16xbf16, #tpu.memory_space<vmem>>, vector<1x16x16xbf16>
    %37 = vector.shape_cast %36 : vector<1x16x16xbf16> to vector<16x16xbf16>
    %38 = arith.truncf %24 : vector<16x256xf32> to vector<16x256xbf16>
    %cst_26 = arith.constant dense<0.000000e+00> : vector<16x256xf32>
    %39 = tpu.matmul %37, %38, %cst_26 {dimension_numbers = #tpu.dot_dimension_numbers<[1], [0], [0], [1], [0, 0, 1, 1], [], []>} : vector<16x16xbf16>, vector<16x256xbf16>, vector<16x256xf32> -> vector<16x256xf32>
    %40 = arith.addf %35, %39 : vector<16x256xf32>
    %c1_27 = arith.constant 1 : index
    %c0_28 = arith.constant 0 : index
    %c0_29 = arith.constant 0 : index
    %41 = vector.load %arg4[%c1_27, %c0_28, %c0_29] : memref<4x16x1xf32, #tpu.memory_space<vmem>>, vector<1x16x1xf32>
    %42 = vector.shape_cast %41 : vector<1x16x1xf32> to vector<16x1xf32>
    %43 = vector.broadcast %42 : vector<16x1xf32> to vector<16x256xf32>
    %44 = arith.addf %40, %43 : vector<16x256xf32>
    %cst_30 = arith.constant 0.000000e+00 : f32
    %45 = vector.broadcast %cst_30 : f32 to vector<16x256xf32>
    %46 = arith.maximumf %44, %45 : vector<16x256xf32>
    %c0_31 = arith.constant 0 : index
    %c0_32 = arith.constant 0 : index
    %c0_33 = arith.constant 0 : index
    %47 = vector.load %arg5[%c0_31, %c0_32, %c0_33] : memref<1x16x16xbf16, #tpu.memory_space<vmem>>, vector<1x16x16xbf16>
    %48 = vector.shape_cast %47 : vector<1x16x16xbf16> to vector<16x16xbf16>
    %49 = arith.truncf %2 : vector<16x256xf32> to vector<16x256xbf16>
    %cst_34 = arith.constant dense<0.000000e+00> : vector<16x256xf32>
    %50 = tpu.matmul %48, %49, %cst_34 {dimension_numbers = #tpu.dot_dimension_numbers<[1], [0], [0], [1], [0, 0, 1, 1], [], []>} : vector<16x16xbf16>, vector<16x256xbf16>, vector<16x256xf32> -> vector<16x256xf32>
    %c0_35 = arith.constant 0 : index
    %c0_36 = arith.constant 0 : index
    %c0_37 = arith.constant 0 : index
    %51 = vector.load %arg6[%c0_35, %c0_36, %c0_37] : memref<1x16x1xf32, #tpu.memory_space<vmem>>, vector<1x16x1xf32>
    %52 = vector.shape_cast %51 : vector<1x16x1xf32> to vector<16x1xf32>
    %53 = vector.broadcast %52 : vector<16x1xf32> to vector<16x256xf32>
    %54 = arith.addf %50, %53 : vector<16x256xf32>
    %55 = arith.addf %46, %54 : vector<16x256xf32>
    %cst_38 = arith.constant 0.000000e+00 : f32
    %56 = vector.broadcast %cst_38 : f32 to vector<16x256xf32>
    %57 = arith.maximumf %55, %56 : vector<16x256xf32>
    %c4_i32 = arith.constant 4 : i32
    %58 = tpu.dynamic_rotate %57 by %c4_i32 dim 1 : vector<16x256xf32>, i32 -> vector<16x256xf32>
    %c6 = arith.constant 6 : index
    %c0_39 = arith.constant 0 : index
    %c0_40 = arith.constant 0 : index
    %59 = vector.load %arg3[%c6, %c0_39, %c0_40] : memref<12x16x16xbf16, #tpu.memory_space<vmem>>, vector<1x16x16xbf16>
    %60 = vector.shape_cast %59 : vector<1x16x16xbf16> to vector<16x16xbf16>
    %61 = arith.truncf %58 : vector<16x256xf32> to vector<16x256xbf16>
    %cst_41 = arith.constant dense<0.000000e+00> : vector<16x256xf32>
    %62 = tpu.matmul %60, %61, %cst_41 {dimension_numbers = #tpu.dot_dimension_numbers<[1], [0], [0], [1], [0, 0, 1, 1], [], []>} : vector<16x16xbf16>, vector<16x256xbf16>, vector<16x256xf32> -> vector<16x256xf32>
    %c2_i32_42 = arith.constant 2 : i32
    %63 = tpu.dynamic_rotate %57 by %c2_i32_42 dim 1 : vector<16x256xf32>, i32 -> vector<16x256xf32>
    %c7 = arith.constant 7 : index
    %c0_43 = arith.constant 0 : index
    %c0_44 = arith.constant 0 : index
    %64 = vector.load %arg3[%c7, %c0_43, %c0_44] : memref<12x16x16xbf16, #tpu.memory_space<vmem>>, vector<1x16x16xbf16>
    %65 = vector.shape_cast %64 : vector<1x16x16xbf16> to vector<16x16xbf16>
    %66 = arith.truncf %63 : vector<16x256xf32> to vector<16x256xbf16>
    %cst_45 = arith.constant dense<0.000000e+00> : vector<16x256xf32>
    %67 = tpu.matmul %65, %66, %cst_45 {dimension_numbers = #tpu.dot_dimension_numbers<[1], [0], [0], [1], [0, 0, 1, 1], [], []>} : vector<16x16xbf16>, vector<16x256xbf16>, vector<16x256xf32> -> vector<16x256xf32>
    %68 = arith.addf %62, %67 : vector<16x256xf32>
    %c8 = arith.constant 8 : index
    %c0_46 = arith.constant 0 : index
    %c0_47 = arith.constant 0 : index
    %69 = vector.load %arg3[%c8, %c0_46, %c0_47] : memref<12x16x16xbf16, #tpu.memory_space<vmem>>, vector<1x16x16xbf16>
    %70 = vector.shape_cast %69 : vector<1x16x16xbf16> to vector<16x16xbf16>
    %71 = arith.truncf %57 : vector<16x256xf32> to vector<16x256xbf16>
    %cst_48 = arith.constant dense<0.000000e+00> : vector<16x256xf32>
    %72 = tpu.matmul %70, %71, %cst_48 {dimension_numbers = #tpu.dot_dimension_numbers<[1], [0], [0], [1], [0, 0, 1, 1], [], []>} : vector<16x16xbf16>, vector<16x256xbf16>, vector<16x256xf32> -> vector<16x256xf32>
    %73 = arith.addf %68, %72 : vector<16x256xf32>
    %c2_49 = arith.constant 2 : index
    %c0_50 = arith.constant 0 : index
    %c0_51 = arith.constant 0 : index
    %74 = vector.load %arg4[%c2_49, %c0_50, %c0_51] : memref<4x16x1xf32, #tpu.memory_space<vmem>>, vector<1x16x1xf32>
    %75 = vector.shape_cast %74 : vector<1x16x1xf32> to vector<16x1xf32>
    %76 = vector.broadcast %75 : vector<16x1xf32> to vector<16x256xf32>
    %77 = arith.addf %73, %76 : vector<16x256xf32>
    %cst_52 = arith.constant 0.000000e+00 : f32
    %78 = vector.broadcast %cst_52 : f32 to vector<16x256xf32>
    %79 = arith.maximumf %77, %78 : vector<16x256xf32>
    %c4_i32_53 = arith.constant 4 : i32
    %80 = tpu.dynamic_rotate %79 by %c4_i32_53 dim 1 : vector<16x256xf32>, i32 -> vector<16x256xf32>
    %c9 = arith.constant 9 : index
    %c0_54 = arith.constant 0 : index
    %c0_55 = arith.constant 0 : index
    %81 = vector.load %arg3[%c9, %c0_54, %c0_55] : memref<12x16x16xbf16, #tpu.memory_space<vmem>>, vector<1x16x16xbf16>
    %82 = vector.shape_cast %81 : vector<1x16x16xbf16> to vector<16x16xbf16>
    %83 = arith.truncf %80 : vector<16x256xf32> to vector<16x256xbf16>
    %cst_56 = arith.constant dense<0.000000e+00> : vector<16x256xf32>
    %84 = tpu.matmul %82, %83, %cst_56 {dimension_numbers = #tpu.dot_dimension_numbers<[1], [0], [0], [1], [0, 0, 1, 1], [], []>} : vector<16x16xbf16>, vector<16x256xbf16>, vector<16x256xf32> -> vector<16x256xf32>
    %c2_i32_57 = arith.constant 2 : i32
    %85 = tpu.dynamic_rotate %79 by %c2_i32_57 dim 1 : vector<16x256xf32>, i32 -> vector<16x256xf32>
    %c10 = arith.constant 10 : index
    %c0_58 = arith.constant 0 : index
    %c0_59 = arith.constant 0 : index
    %86 = vector.load %arg3[%c10, %c0_58, %c0_59] : memref<12x16x16xbf16, #tpu.memory_space<vmem>>, vector<1x16x16xbf16>
    %87 = vector.shape_cast %86 : vector<1x16x16xbf16> to vector<16x16xbf16>
    %88 = arith.truncf %85 : vector<16x256xf32> to vector<16x256xbf16>
    %cst_60 = arith.constant dense<0.000000e+00> : vector<16x256xf32>
    %89 = tpu.matmul %87, %88, %cst_60 {dimension_numbers = #tpu.dot_dimension_numbers<[1], [0], [0], [1], [0, 0, 1, 1], [], []>} : vector<16x16xbf16>, vector<16x256xbf16>, vector<16x256xf32> -> vector<16x256xf32>
    %90 = arith.addf %84, %89 : vector<16x256xf32>
    %c11 = arith.constant 11 : index
    %c0_61 = arith.constant 0 : index
    %c0_62 = arith.constant 0 : index
    %91 = vector.load %arg3[%c11, %c0_61, %c0_62] : memref<12x16x16xbf16, #tpu.memory_space<vmem>>, vector<1x16x16xbf16>
    %92 = vector.shape_cast %91 : vector<1x16x16xbf16> to vector<16x16xbf16>
    %93 = arith.truncf %79 : vector<16x256xf32> to vector<16x256xbf16>
    %cst_63 = arith.constant dense<0.000000e+00> : vector<16x256xf32>
    %94 = tpu.matmul %92, %93, %cst_63 {dimension_numbers = #tpu.dot_dimension_numbers<[1], [0], [0], [1], [0, 0, 1, 1], [], []>} : vector<16x16xbf16>, vector<16x256xbf16>, vector<16x256xf32> -> vector<16x256xf32>
    %95 = arith.addf %90, %94 : vector<16x256xf32>
    %c3_64 = arith.constant 3 : index
    %c0_65 = arith.constant 0 : index
    %c0_66 = arith.constant 0 : index
    %96 = vector.load %arg4[%c3_64, %c0_65, %c0_66] : memref<4x16x1xf32, #tpu.memory_space<vmem>>, vector<1x16x1xf32>
    %97 = vector.shape_cast %96 : vector<1x16x1xf32> to vector<16x1xf32>
    %98 = vector.broadcast %97 : vector<16x1xf32> to vector<16x256xf32>
    %99 = arith.addf %95, %98 : vector<16x256xf32>
    %cst_67 = arith.constant 0.000000e+00 : f32
    %100 = vector.broadcast %cst_67 : f32 to vector<16x256xf32>
    %101 = arith.maximumf %99, %100 : vector<16x256xf32>
    %102 = arith.addf %101, %57 : vector<16x256xf32>
    %cst_68 = arith.constant 0.000000e+00 : f32
    %103 = vector.broadcast %cst_68 : f32 to vector<16x256xf32>
    %104 = arith.maximumf %102, %103 : vector<16x256xf32>
    %105 = vector.extract_strided_slice %104 {offsets = [0, 128], sizes = [16, 128], strides = [1, 1]} : vector<16x256xf32> to vector<16x128xf32>
    %c0_69 = arith.constant 0 : index
    %c0_70 = arith.constant 0 : index
    %106 = vector.load %arg10[%c0_69, %c0_70] : memref<16x128xf32, #tpu.memory_space<vmem>>, vector<16x128xf32>
    tpu.vector_store %arg10[%c0_69, %c0_70], %105 {strides = array<i32>} : memref<16x128xf32, #tpu.memory_space<vmem>>, vector<16x128xf32>,
    %c0_71 = arith.constant 0 : index
    %c0_72 = arith.constant 0 : index
    %107 = vector.load %arg7[%c0_71, %c0_72] : memref<16x16xbf16, #tpu.memory_space<vmem>>, vector<16x16xbf16>
    %108 = arith.truncf %105 : vector<16x128xf32> to vector<16x128xbf16>
    %cst_73 = arith.constant dense<0.000000e+00> : vector<16x128xf32>
    %109 = tpu.matmul %107, %108, %cst_73 {dimension_numbers = #tpu.dot_dimension_numbers<[1], [0], [0], [1], [0, 0, 1, 1], [], []>} : vector<16x16xbf16>, vector<16x128xbf16>, vector<16x128xf32> -> vector<16x128xf32>
    %c0_74 = arith.constant 0 : index
    %c0_75 = arith.constant 0 : index
    %110 = vector.load %arg8[%c0_74, %c0_75] : memref<16x1xf32, #tpu.memory_space<vmem>>, vector<16x1xf32>
    %111 = vector.broadcast %110 : vector<16x1xf32> to vector<16x128xf32>
    %112 = arith.addf %109, %111 : vector<16x128xf32>
    %c0_76 = arith.constant 0 : index
    %c0_77 = arith.constant 0 : index
    %113 = vector.load %arg9[%c0_76, %c0_77] : memref<16x128xf32, #tpu.memory_space<vmem>>, vector<16x128xf32>
    tpu.vector_store %arg9[%c0_76, %c0_77], %112 {strides = array<i32>} : memref<16x128xf32, #tpu.memory_space<vmem>>, vector<16x128xf32>,
    return
  }
  func.func @transform_0(%arg0: i32) -> (i32, i32) {
    %c0_i32 = arith.constant 0 : i32
    %c0_i32_0 = arith.constant 0 : i32
    return %c0_i32, %arg0 : i32, i32
  }
  func.func @transform_1(%arg0: i32) -> (i32, i32) {
    %c1_i32 = arith.constant 1 : i32
    %0 = arith.addi %arg0, %c1_i32 : i32
    %c0_i32 = arith.constant 0 : i32
    %c0_i32_0 = arith.constant 0 : i32
    return %c0_i32, %0 : i32, i32
  }
  func.func @transform_2(%arg0: i32) -> (i32, i32, i32) {
    %c0_i32 = arith.constant 0 : i32
    %c0_i32_0 = arith.constant 0 : i32
    %c0_i32_1 = arith.constant 0 : i32
    %c0_i32_2 = arith.constant 0 : i32
    return %c0_i32, %c0_i32_0, %c0_i32_1 : i32, i32, i32
  }
  func.func @transform_3(%arg0: i32) -> (i32, i32, i32) {
    %c0_i32 = arith.constant 0 : i32
    %c0_i32_0 = arith.constant 0 : i32
    %c0_i32_1 = arith.constant 0 : i32
    %c0_i32_2 = arith.constant 0 : i32
    return %c0_i32, %c0_i32_0, %c0_i32_1 : i32, i32, i32
  }
  func.func @transform_4(%arg0: i32) -> (i32, i32, i32) {
    %c0_i32 = arith.constant 0 : i32
    %c0_i32_0 = arith.constant 0 : i32
    %c0_i32_1 = arith.constant 0 : i32
    %c0_i32_2 = arith.constant 0 : i32
    return %c0_i32, %c0_i32_0, %c0_i32_1 : i32, i32, i32
  }
  func.func @transform_5(%arg0: i32) -> (i32, i32, i32) {
    %c0_i32 = arith.constant 0 : i32
    %c0_i32_0 = arith.constant 0 : i32
    %c0_i32_1 = arith.constant 0 : i32
    %c0_i32_2 = arith.constant 0 : i32
    return %c0_i32, %c0_i32_0, %c0_i32_1 : i32, i32, i32
  }
  func.func @transform_6(%arg0: i32) -> (i32, i32) {
    %c0_i32 = arith.constant 0 : i32
    %c0_i32_0 = arith.constant 0 : i32
    %c0_i32_1 = arith.constant 0 : i32
    return %c0_i32, %c0_i32_0 : i32, i32
  }
  func.func @transform_7(%arg0: i32) -> (i32, i32) {
    %c0_i32 = arith.constant 0 : i32
    %c0_i32_0 = arith.constant 0 : i32
    %c0_i32_1 = arith.constant 0 : i32
    return %c0_i32, %c0_i32_0 : i32, i32
  }
  func.func @transform_8(%arg0: i32) -> (i32, i32) {
    %c0_i32 = arith.constant 0 : i32
    %c0_i32_0 = arith.constant 0 : i32
    return %c0_i32, %arg0 : i32, i32
  }
  func.func @transform_9(%arg0: i32) -> (i32, i32) {
    %c0_i32 = arith.constant 0 : i32
    %c0_i32_0 = arith.constant 0 : i32
    return %c0_i32, %arg0 : i32, i32
  }
}

</mosaic_0001>

<llo_original>
// kernel: tpu_custom_call.1
$region0: #{tpu_custom_call.1}
  #allocation0 [shape = 'u32[]', space=smem, size = 0x4, offset = 0x4, fixed_abs, tag = 'smem constant byte address 0x4 - core index']
  #allocation1 [shape = 'u32[144,128]{1,0:T(1,128)}', space=vmem, size = 0x12000, scoped, tag = 'internal scratch']
  %s0 = inlined_call_operand.hbm [shape: f32[16,256], index: 0, kind: input, shape index: {}]
  %s1 = inlined_call_operand.hbm [shape: f32[16,256], index: 1, kind: input, shape index: {}]
  %s2 = inlined_call_operand.vmem [shape: bf16[12,16,16], index: 2, kind: input, shape index: {}]
  %s3 = inlined_call_operand.vmem [shape: f32[4,16,1], index: 3, kind: input, shape index: {}]
  %s4 = inlined_call_operand.vmem [shape: bf16[1,16,16], index: 4, kind: input, shape index: {}]
  %s5 = inlined_call_operand.vmem [shape: f32[1,16,1], index: 5, kind: input, shape index: {}]
  %s6 = inlined_call_operand.vmem [shape: bf16[16,16], index: 6, kind: input, shape index: {}]
  %s7 = inlined_call_operand.vmem [shape: f32[16,1], index: 7, kind: input, shape index: {}]
  %s8 = inlined_call_operand.hbm [shape: f32[16,128], index: 8, kind: output, shape index: {0}]
  %s9 = inlined_call_operand.hbm [shape: f32[16,128], index: 9, kind: output, shape index: {1}]
  %10 = xla_tuple %s8, %s9
  %s11 = sld [smem:[#allocation0]]
  $region58: #{tpu_custom_call.1} parent=0
    _
  %s13 = ssub.s32 1, %s11
  %s14 = scalar_select 0, %s13, %s11
  $region1: #{tpu_custom_call.1} parent=0
    #allocation2 [shape = 'u8[8192]{0}', space=vmem, size = 0x2000, scoped, tag = 'input window, operand 0, single buffered']
    #allocation3 [shape = 's32[1]{0}', space=sflag, size = 0x4, scoped, tag = 'scoped memory for tpu_custom_call.1']
    #allocation4 [shape = 's32[1]{0}', space=sflag, size = 0x4, scoped, tag = 'scoped memory for tpu_custom_call.1']
    #allocation5 [shape = 'u8[8192]{0}', space=vmem, size = 0x2000, scoped, tag = 'input window, operand 1, single buffered']
    #allocation6 [shape = 's32[1]{0}', space=sflag, size = 0x4, scoped, tag = 'scoped memory for tpu_custom_call.1']
    #allocation7 [shape = 'u8[8192]{0}', space=vmem, size = 0x2000, scoped, tag = 'output window, operand 0, single buffered']
    #allocation8 [shape = 'u8[8192]{0}', space=vmem, size = 0x2000, scoped, tag = 'output window, operand 1, single buffered']
    #allocation9 [shape = 's32[1]{0}', space=sflag, size = 0x4, scoped, tag = 'scoped memory for tpu_custom_call.1']
    %15 = vsyncpa [#allocation3], 0
    %16 = vsyncpa [#allocation6], 0
    %17 = vsyncpa [#allocation4], 0
    %18 = vsyncpa [#allocation9], 0
    // Predicated region
    $region2: #{tpu_custom_call.1} parent=1 // pred_check
      _
    $region3: #{tpu_custom_call.1} parent=1 // pred_check_branch
      %20 = sbr.rel (0) target = $region5
    $region4: #{tpu_custom_call.1} parent=1 // pred_region
      %s22 = ssub.s32 256, 256
      %23 = vsyncadd [#allocation3], %s22
      %s24 = sshll.u32 [#allocation2], 4
      %s25 = int_to_ptr.vmem [resolvable:$true] %s24
      %30 = dma.hbm_to_vmem [thread:$0]  %s0, 256, %s25, [#allocation3], 256, 128, 8
    $region5: #{tpu_custom_call.1} parent=1 // pred_fallthru
      _
    // Predicated region
    $region6: #{tpu_custom_call.1} parent=1 // pred_check
      _
    $region7: #{tpu_custom_call.1} parent=1 // pred_check_branch
      %32 = sbr.rel (0) target = $region9
    $region8: #{tpu_custom_call.1} parent=1 // pred_region
      %s33 = sadd.s32 0, 1
      %s35 = ssub.s32 256, 256
      %36 = vsyncadd [#allocation6], %s35
      %s37 = smul.addr %s33, 128
      %s38 = scalar_lea.hbm %s1, %s37
      %s39 = sshll.u32 [#allocation5], 4
      %s40 = int_to_ptr.vmem [resolvable:$true] %s39
      %45 = dma.hbm_to_vmem [thread:$0]  %s38, 256, %s40, [#allocation6], 256, 128, 8
    $region9: #{tpu_custom_call.1} parent=1 // pred_fallthru
      _
    // Predicated region
    $region10: #{tpu_custom_call.1} parent=1 // pred_check
      _
    $region11: #{tpu_custom_call.1} parent=1 // pred_check_branch
      %47 = sbr.rel (0) target = $region13
    $region12: #{tpu_custom_call.1} parent=1 // pred_region
      _
    $region13: #{tpu_custom_call.1} parent=1 // pred_fallthru
      _
    // Predicated region
    $region14: #{tpu_custom_call.1} parent=1 // pred_check
      _
    $region15: #{tpu_custom_call.1} parent=1 // pred_check_branch
      %49 = sbr.rel (0) target = $region17
    $region16: #{tpu_custom_call.1} parent=1 // pred_region
      _
    $region17: #{tpu_custom_call.1} parent=1 // pred_fallthru
      _
    // Predicated region
    $region18: #{tpu_custom_call.1} parent=1 // pred_check
      _
    $region19: #{tpu_custom_call.1} parent=1 // pred_check_branch
      %51 = sbr.rel (0) target = $region21
    $region20: #{tpu_custom_call.1} parent=1 // pred_region
      _
    $region21: #{tpu_custom_call.1} parent=1 // pred_fallthru
      _
    // Predicated region
    $region22: #{tpu_custom_call.1} parent=1 // pred_check
      _
    $region23: #{tpu_custom_call.1} parent=1 // pred_check_branch
      %53 = sbr.rel (0) target = $region25
    $region24: #{tpu_custom_call.1} parent=1 // pred_region
      _
    $region25: #{tpu_custom_call.1} parent=1 // pred_fallthru
      _
    // Predicated region
    $region26: #{tpu_custom_call.1} parent=1 // pred_check
      _
    $region27: #{tpu_custom_call.1} parent=1 // pred_check_branch
      %55 = sbr.rel (0) target = $region29
    $region28: #{tpu_custom_call.1} parent=1 // pred_region
      _
    $region29: #{tpu_custom_call.1} parent=1 // pred_fallthru
      _
    // Predicated region
    $region30: #{tpu_custom_call.1} parent=1 // pred_check
      _
    $region31: #{tpu_custom_call.1} parent=1 // pred_check_branch
      %57 = sbr.rel (0) target = $region33
    $region32: #{tpu_custom_call.1} parent=1 // pred_region
      _
    $region33: #{tpu_custom_call.1} parent=1 // pred_fallthru
      _
    // Predicated region
    $region34: #{tpu_custom_call.1} parent=1 // pred_check
      _
    $region35: #{tpu_custom_call.1} parent=1 // pred_check_branch
      %59 = sbr.rel (0) target = $region37
    $region36: #{tpu_custom_call.1} parent=1 // pred_region
      %60 = dma.done [#allocation3], 256
    $region37: #{tpu_custom_call.1} parent=1 // pred_fallthru
      _
    // Predicated region
    $region38: #{tpu_custom_call.1} parent=1 // pred_check
      _
    $region39: #{tpu_custom_call.1} parent=1 // pred_check_branch
      %62 = sbr.rel (0) target = $region41
    $region40: #{tpu_custom_call.1} parent=1 // pred_region
      %63 = dma.done [#allocation6], 256
    $region41: #{tpu_custom_call.1} parent=1 // pred_fallthru
      _
    %s64 = sadd.s32 0, 1
    %v66 = vld [vmem:[#allocation2] sm:$0xff]
    %v67 = vld [vmem:[#allocation2 + $0x8] sm:$0xff]
    %v68 = vld [vmem:[#allocation5] sm:$0xff]
    %v69 = vld [vmem:[#allocation5 + $0x8] sm:$0xff]
    %70 = vrot.lane.b32.xlu0 %v66, 2
    %v71 = vpop.permute.xlu0 %70
    %72 = vrot.lane.b32.xlu0 %v67, 2
    %v73 = vpop.permute.xlu0 %72
    %74 = vrot.lane.b32.xlu0 %v68, 2
    %v75 = vpop.permute.xlu0 %74
    %76 = vrot.lane.b32.xlu0 %v69, 2
    %v77 = vpop.permute.xlu0 %76
    %v78 = vlaneseq
    %v79 = vand.u32 %v78, 127
    %vm80 = vcmp.lt.s32.totalorder %v79, 2
    %v81 = vsel %vm80, %v71, %v75
    %v82 = vsel %vm80, %v73, %v77
    %v83 = vsel %vm80, %v75, %v71
    %v84 = vsel %vm80, %v77, %v73
    %v85 = vld [vmem:[%s2] sm:$0xf]
    %v86 = vld [vmem:[%s2 + $0x4] sm:$0xf]
    %v87 = vpack.c.bf16 %v84, %v83
    %v88 = vpack.c.bf16 %v82, %v81
    %89 = vrot.lane.b32.xlu0 %v66, 1
    %v90 = vpop.permute.xlu0 %89
    %91 = vrot.lane.b32.xlu0 %v67, 1
    %v92 = vpop.permute.xlu0 %91
    %93 = vrot.lane.b32.xlu0 %v68, 1
    %v94 = vpop.permute.xlu0 %93
    %95 = vrot.lane.b32.xlu0 %v69, 1
    %v96 = vpop.permute.xlu0 %95
    %vm97 = vcmp.lt.s32.totalorder %v79, 1
    %v98 = vsel %vm97, %v90, %v94
    %v99 = vsel %vm97, %v92, %v96
    %v100 = vsel %vm97, %v94, %v90
    %v101 = vsel %vm97, %v96, %v92
    %s102 = scalar_lea.vmem %s2, 8
    %v103 = vld [vmem:[%s102] sm:$0xf]
    %v104 = vld [vmem:[%s102 + $0x4] sm:$0xf]
    %v105 = vpack.c.bf16 %v101, %v100
    %v106 = vpack.c.bf16 %v99, %v98
    %v109 = vunpack.c.l.b16 %v103
    %v110 = vunpack.c.l.b16 %v104
    %v111 = vpack.c.b16 %v110, %v109
    %vm112 = vcmask 130048
    %v114 = vsel %vm112, %v111, 0
    %116 = vmatprep.subr.bf16.mxu0 %v106
    %117 = vmatpush1.bf16.msra.mxu0 %v105
    %118 = vmatprep.subr.bf16.mxu0 0
    %119 = vmatpush1.bf16.msra.mxu0 0
    %120 = vmatprep.subr.bf16.mxu0 0
    %121 = vmatpush1.bf16.msra.mxu0 0
    %122 = vmatprep.subr.bf16.mxu0 0
    %123 = vmatpush1.bf16.msra.mxu0 0
    %124 = vmatprep.subr.bf16.mxu0 0
    %125 = vmatpush1.bf16.msra.mxu0 0
    %126 = vmatprep.subr.bf16.mxu0 0
    %127 = vmatpush1.bf16.msra.mxu0 0
    %128 = vmatprep.subr.bf16.mxu0 0
    %129 = vmatpush1.bf16.msra.mxu0 0
    %130 = vmatprep.subr.bf16.mxu0 0
    %131 = vmatpush1.bf16.msra.mxu0 0
    %132 = vmatprep.subr.bf16.mxu0 0
    %133 = vmatpush1.bf16.msra.mxu0 0
    %134 = vmatprep.subr.bf16.mxu0 0
    %135 = vmatpush1.bf16.msra.mxu0 0
    %136 = vmatprep.subr.bf16.mxu0 0
    %137 = vmatpush1.bf16.msra.mxu0 0
    %138 = vmatprep.subr.bf16.mxu0 0
    %139 = vmatpush1.bf16.msra.mxu0 0
    %140 = vmatprep.subr.bf16.mxu0 0
    %141 = vmatpush1.bf16.msra.mxu0 0
    %142 = vmatprep.subr.bf16.mxu0 0
    %143 = vmatpush1.bf16.msra.mxu0 0
    %144 = vmatprep.subr.bf16.mxu0 0
    %145 = vmatpush1.bf16.msra.mxu0 0
    %146 = vmatprep.subr.bf16.mxu0 0
    %147 = vmatpush1.bf16.msra.mxu0 0
    %148 = vmatprep.mubr.bf16.mxu0 0
    %149 = vmatmul.mubr.bf16.gmra.mrb[0].mxu0 %v114
    %v150 = vpop.f32.mrb[0].mxu0
    %v151 = vadd.f32 0.0, %v150
    %v152 = vpop.f32.mrb[0].mxu0
    %v153 = vadd.f32 0.0, %v152
    %v154 = vpop.f32.mrb[0].mxu0
    %v155 = vadd.f32 0.0, %v154
    %v156 = vpop.f32.mrb[0].mxu0
    %v157 = vadd.f32 0.0, %v156
    %158 = vdwg.mxu0
    %v161 = vunpack.c.l.b16 %v85
    %v162 = vunpack.c.l.b16 %v86
    %v163 = vpack.c.b16 %v162, %v161
    %v165 = vsel %vm112, %v163, 0
    %167 = vmatprep.subr.bf16.mxu0 %v88
    %168 = vmatpush1.bf16.msra.mxu0 %v87
    %169 = vmatprep.subr.bf16.mxu0 0
    %170 = vmatpush1.bf16.msra.mxu0 0
    %171 = vmatprep.subr.bf16.mxu0 0
    %172 = vmatpush1.bf16.msra.mxu0 0
    %173 = vmatprep.subr.bf16.mxu0 0
    %174 = vmatpush1.bf16.msra.mxu0 0
    %175 = vmatprep.subr.bf16.mxu0 0
    %176 = vmatpush1.bf16.msra.mxu0 0
    %177 = vmatprep.subr.bf16.mxu0 0
    %178 = vmatpush1.bf16.msra.mxu0 0
    %179 = vmatprep.subr.bf16.mxu0 0
    %180 = vmatpush1.bf16.msra.mxu0 0
    %181 = vmatprep.subr.bf16.mxu0 0
    %182 = vmatpush1.bf16.msra.mxu0 0
    %183 = vmatprep.subr.bf16.mxu0 0
    %184 = vmatpush1.bf16.msra.mxu0 0
    %185 = vmatprep.subr.bf16.mxu0 0
    %186 = vmatpush1.bf16.msra.mxu0 0
    %187 = vmatprep.subr.bf16.mxu0 0
    %188 = vmatpush1.bf16.msra.mxu0 0
    %189 = vmatprep.subr.bf16.mxu0 0
    %190 = vmatpush1.bf16.msra.mxu0 0
    %191 = vmatprep.subr.bf16.mxu0 0
    %192 = vmatpush1.bf16.msra.mxu0 0
    %193 = vmatprep.subr.bf16.mxu0 0
    %194 = vmatpush1.bf16.msra.mxu0 0
    %195 = vmatprep.subr.bf16.mxu0 0
    %196 = vmatpush1.bf16.msra.mxu0 0
    %197 = vmatprep.subr.bf16.mxu0 0
    %198 = vmatpush1.bf16.msra.mxu0 0
    %199 = vmatprep.mubr.bf16.mxu0 0
    %200 = vmatmul.mubr.bf16.gmra.mrb[0].mxu0 %v165
    %v201 = vpop.f32.mrb[0].mxu0
    %v202 = vadd.f32 %v151, %v201
    %v203 = vpop.f32.mrb[0].mxu0
    %v204 = vadd.f32 %v153, %v203
    %v205 = vpop.f32.mrb[0].mxu0
    %v206 = vadd.f32 %v155, %v205
    %v207 = vpop.f32.mrb[0].mxu0
    %v208 = vadd.f32 %v157, %v207
    %209 = vdwg.mxu0
    %s210 = scalar_lea.vmem %s2, 16
    %v211 = vld [vmem:[%s210] sm:$0xf]
    %v212 = vld [vmem:[%s210 + $0x4] sm:$0xf]
    %v213 = vpack.c.bf16 %v67, %v66
    %v214 = vpack.c.bf16 %v69, %v68
    %v217 = vunpack.c.l.b16 %v211
    %v218 = vunpack.c.l.b16 %v212
    %v219 = vpack.c.b16 %v218, %v217
    %v221 = vsel %vm112, %v219, 0
    %223 = vmatprep.subr.bf16.mxu0 %v214
    %224 = vmatpush1.bf16.msra.mxu0 %v213
    %225 = vmatprep.subr.bf16.mxu0 0
    %226 = vmatpush1.bf16.msra.mxu0 0
    %227 = vmatprep.subr.bf16.mxu0 0
    %228 = vmatpush1.bf16.msra.mxu0 0
    %229 = vmatprep.subr.bf16.mxu0 0
    %230 = vmatpush1.bf16.msra.mxu0 0
    %231 = vmatprep.subr.bf16.mxu0 0
    %232 = vmatpush1.bf16.msra.mxu0 0
    %233 = vmatprep.subr.bf16.mxu0 0
    %234 = vmatpush1.bf16.msra.mxu0 0
    %235 = vmatprep.subr.bf16.mxu0 0
    %236 = vmatpush1.bf16.msra.mxu0 0
    %237 = vmatprep.subr.bf16.mxu0 0
    %238 = vmatpush1.bf16.msra.mxu0 0
    %239 = vmatprep.subr.bf16.mxu0 0
    %240 = vmatpush1.bf16.msra.mxu0 0
    %241 = vmatprep.subr.bf16.mxu0 0
    %242 = vmatpush1.bf16.msra.mxu0 0
    %243 = vmatprep.subr.bf16.mxu0 0
    %244 = vmatpush1.bf16.msra.mxu0 0
    %245 = vmatprep.subr.bf16.mxu0 0
    %246 = vmatpush1.bf16.msra.mxu0 0
    %247 = vmatprep.subr.bf16.mxu0 0
    %248 = vmatpush1.bf16.msra.mxu0 0
    %249 = vmatprep.subr.bf16.mxu0 0
    %250 = vmatpush1.bf16.msra.mxu0 0
    %251 = vmatprep.subr.bf16.mxu0 0
    %252 = vmatpush1.bf16.msra.mxu0 0
    %253 = vmatprep.subr.bf16.mxu0 0
    %254 = vmatpush1.bf16.msra.mxu0 0
    %255 = vmatprep.mubr.bf16.mxu0 0
    %256 = vmatmul.mubr.bf16.gmra.mrb[0].mxu0 %v221
    %v257 = vpop.f32.mrb[0].mxu0
    %v258 = vadd.f32 0.0, %v257
    %v259 = vpop.f32.mrb[0].mxu0
    %v260 = vadd.f32 0.0, %v259
    %v261 = vpop.f32.mrb[0].mxu0
    %v262 = vadd.f32 0.0, %v261
    %v263 = vpop.f32.mrb[0].mxu0
    %v264 = vadd.f32 0.0, %v263
    %265 = vdwg.mxu0
    %v266 = vadd.f32 %v202, %v258
    %v267 = vadd.f32 %v204, %v260
    %v268 = vadd.f32 %v206, %v262
    %v269 = vadd.f32 %v208, %v264
    %v270 = vld [vmem:[%s3] sm:$0xff]
    %v271 = vld [vmem:[%s3 + $0x8] sm:$0xff]
    %273 = vset.pattern.permute.xlu0 0
    %274 = vperm.xlu0 %273, %v270
    %v275 = vpop.permute.xlu0 %274
    %278 = vset.pattern.permute.xlu0 0
    %279 = vperm.xlu0 %278, %v271
    %v280 = vpop.permute.xlu0 %279
    %v282 = vadd.f32 %v266, %v275
    %v283 = vadd.f32 %v267, %v275
    %v284 = vadd.f32 %v268, %v280
    %v285 = vadd.f32 %v269, %v280
    %v286 = vmax.f32 %v282, 0.0
    %v287 = vmax.f32 %v283, 0.0
    %v288 = vmax.f32 %v284, 0.0
    %v289 = vmax.f32 %v285, 0.0
    %290 = vrot.lane.b32.xlu0 %v286, 2
    %v291 = vpop.permute.xlu0 %290
    %292 = vrot.lane.b32.xlu0 %v288, 2
    %v293 = vpop.permute.xlu0 %292
    %294 = vrot.lane.b32.xlu0 %v287, 2
    %v295 = vpop.permute.xlu0 %294
    %296 = vrot.lane.b32.xlu0 %v289, 2
    %v297 = vpop.permute.xlu0 %296
    %v298 = vsel %vm80, %v291, %v295
    %v299 = vsel %vm80, %v293, %v297
    %v300 = vsel %vm80, %v295, %v291
    %v301 = vsel %vm80, %v297, %v293
    %s302 = scalar_lea.vmem %s2, 24
    %v303 = vld [vmem:[%s302] sm:$0xf]
    %v304 = vld [vmem:[%s302 + $0x4] sm:$0xf]
    %v305 = vpack.c.bf16 %v301, %v300
    %v306 = vpack.c.bf16 %v299, %v298
    %307 = vrot.lane.b32.xlu0 %v286, 1
    %v308 = vpop.permute.xlu0 %307
    %309 = vrot.lane.b32.xlu0 %v288, 1
    %v310 = vpop.permute.xlu0 %309
    %311 = vrot.lane.b32.xlu0 %v287, 1
    %v312 = vpop.permute.xlu0 %311
    %313 = vrot.lane.b32.xlu0 %v289, 1
    %v314 = vpop.permute.xlu0 %313
    %v315 = vsel %vm97, %v308, %v312
    %v316 = vsel %vm97, %v310, %v314
    %v317 = vsel %vm97, %v312, %v308
    %v318 = vsel %vm97, %v314, %v310
    %s319 = scalar_lea.vmem %s2, 32
    %v320 = vld [vmem:[%s319] sm:$0xf]
    %v321 = vld [vmem:[%s319 + $0x4] sm:$0xf]
    %v322 = vpack.c.bf16 %v318, %v317
    %v323 = vpack.c.bf16 %v316, %v315
    %v326 = vunpack.c.l.b16 %v320
    %v327 = vunpack.c.l.b16 %v321
    %v328 = vpack.c.b16 %v327, %v326
    %v330 = vsel %vm112, %v328, 0
    %332 = vmatprep.subr.bf16.mxu0 %v323
    %333 = vmatpush1.bf16.msra.mxu0 %v322
    %334 = vmatprep.subr.bf16.mxu0 0
    %335 = vmatpush1.bf16.msra.mxu0 0
    %336 = vmatprep.subr.bf16.mxu0 0
    %337 = vmatpush1.bf16.msra.mxu0 0
    %338 = vmatprep.subr.bf16.mxu0 0
    %339 = vmatpush1.bf16.msra.mxu0 0
    %340 = vmatprep.subr.bf16.mxu0 0
    %341 = vmatpush1.bf16.msra.mxu0 0
    %342 = vmatprep.subr.bf16.mxu0 0
    %343 = vmatpush1.bf16.msra.mxu0 0
    %344 = vmatprep.subr.bf16.mxu0 0
    %345 = vmatpush1.bf16.msra.mxu0 0
    %346 = vmatprep.subr.bf16.mxu0 0
    %347 = vmatpush1.bf16.msra.mxu0 0
    %348 = vmatprep.subr.bf16.mxu0 0
    %349 = vmatpush1.bf16.msra.mxu0 0
    %350 = vmatprep.subr.bf16.mxu0 0
    %351 = vmatpush1.bf16.msra.mxu0 0
    %352 = vmatprep.subr.bf16.mxu0 0
    %353 = vmatpush1.bf16.msra.mxu0 0
    %354 = vmatprep.subr.bf16.mxu0 0
    %355 = vmatpush1.bf16.msra.mxu0 0
    %356 = vmatprep.subr.bf16.mxu0 0
    %357 = vmatpush1.bf16.msra.mxu0 0
    %358 = vmatprep.subr.bf16.mxu0 0
    %359 = vmatpush1.bf16.msra.mxu0 0
    %360 = vmatprep.subr.bf16.mxu0 0
    %361 = vmatpush1.bf16.msra.mxu0 0
    %362 = vmatprep.subr.bf16.mxu0 0
    %363 = vmatpush1.bf16.msra.mxu0 0
    %364 = vmatprep.mubr.bf16.mxu0 0
    %365 = vmatmul.mubr.bf16.gmra.mrb[0].mxu0 %v330
    %v366 = vpop.f32.mrb[0].mxu0
    %v367 = vadd.f32 0.0, %v366
    %v368 = vpop.f32.mrb[0].mxu0
    %v369 = vadd.f32 0.0, %v368
    %v370 = vpop.f32.mrb[0].mxu0
    %v371 = vadd.f32 0.0, %v370
    %v372 = vpop.f32.mrb[0].mxu0
    %v373 = vadd.f32 0.0, %v372
    %374 = vdwg.mxu0
    %v377 = vunpack.c.l.b16 %v303
    %v378 = vunpack.c.l.b16 %v304
    %v379 = vpack.c.b16 %v378, %v377
    %v381 = vsel %vm112, %v379, 0
    %383 = vmatprep.subr.bf16.mxu0 %v306
    %384 = vmatpush1.bf16.msra.mxu0 %v305
    %385 = vmatprep.subr.bf16.mxu0 0
    %386 = vmatpush1.bf16.msra.mxu0 0
    %387 = vmatprep.subr.bf16.mxu0 0
    %388 = vmatpush1.bf16.msra.mxu0 0
    %389 = vmatprep.subr.bf16.mxu0 0
    %390 = vmatpush1.bf16.msra.mxu0 0
    %391 = vmatprep.subr.bf16.mxu0 0
    %392 = vmatpush1.bf16.msra.mxu0 0
    %393 = vmatprep.subr.bf16.mxu0 0
    %394 = vmatpush1.bf16.msra.mxu0 0
    %395 = vmatprep.subr.bf16.mxu0 0
    %396 = vmatpush1.bf16.msra.mxu0 0
    %397 = vmatprep.subr.bf16.mxu0 0
    %398 = vmatpush1.bf16.msra.mxu0 0
    %399 = vmatprep.subr.bf16.mxu0 0
    %400 = vmatpush1.bf16.msra.mxu0 0
    %401 = vmatprep.subr.bf16.mxu0 0
    %402 = vmatpush1.bf16.msra.mxu0 0
    %403 = vmatprep.subr.bf16.mxu0 0
    %404 = vmatpush1.bf16.msra.mxu0 0
    %405 = vmatprep.subr.bf16.mxu0 0
    %406 = vmatpush1.bf16.msra.mxu0 0
    %407 = vmatprep.subr.bf16.mxu0 0
    %408 = vmatpush1.bf16.msra.mxu0 0
    %409 = vmatprep.subr.bf16.mxu0 0
    %410 = vmatpush1.bf16.msra.mxu0 0
    %411 = vmatprep.subr.bf16.mxu0 0
    %412 = vmatpush1.bf16.msra.mxu0 0
    %413 = vmatprep.subr.bf16.mxu0 0
    %414 = vmatpush1.bf16.msra.mxu0 0
    %415 = vmatprep.mubr.bf16.mxu0 0
    %416 = vmatmul.mubr.bf16.gmra.mrb[0].mxu0 %v381
    %v417 = vpop.f32.mrb[0].mxu0
    %v418 = vadd.f32 %v367, %v417
    %v419 = vpop.f32.mrb[0].mxu0
    %v420 = vadd.f32 %v369, %v419
    %v421 = vpop.f32.mrb[0].mxu0
    %v422 = vadd.f32 %v371, %v421
    %v423 = vpop.f32.mrb[0].mxu0
    %v424 = vadd.f32 %v373, %v423
    %425 = vdwg.mxu0
    %s426 = scalar_lea.vmem %s2, 40
    %v427 = vld [vmem:[%s426] sm:$0xf]
    %v428 = vld [vmem:[%s426 + $0x4] sm:$0xf]
    %v429 = vpack.c.bf16 %v288, %v286
    %v430 = vpack.c.bf16 %v289, %v287
    %v433 = vunpack.c.l.b16 %v427
    %v434 = vunpack.c.l.b16 %v428
    %v435 = vpack.c.b16 %v434, %v433
    %v437 = vsel %vm112, %v435, 0
    %439 = vmatprep.subr.bf16.mxu0 %v430
    %440 = vmatpush1.bf16.msra.mxu0 %v429
    %441 = vmatprep.subr.bf16.mxu0 0
    %442 = vmatpush1.bf16.msra.mxu0 0
    %443 = vmatprep.subr.bf16.mxu0 0
    %444 = vmatpush1.bf16.msra.mxu0 0
    %445 = vmatprep.subr.bf16.mxu0 0
    %446 = vmatpush1.bf16.msra.mxu0 0
    %447 = vmatprep.subr.bf16.mxu0 0
    %448 = vmatpush1.bf16.msra.mxu0 0
    %449 = vmatprep.subr.bf16.mxu0 0
    %450 = vmatpush1.bf16.msra.mxu0 0
    %451 = vmatprep.subr.bf16.mxu0 0
    %452 = vmatpush1.bf16.msra.mxu0 0
    %453 = vmatprep.subr.bf16.mxu0 0
    %454 = vmatpush1.bf16.msra.mxu0 0
    %455 = vmatprep.subr.bf16.mxu0 0
    %456 = vmatpush1.bf16.msra.mxu0 0
    %457 = vmatprep.subr.bf16.mxu0 0
    %458 = vmatpush1.bf16.msra.mxu0 0
    %459 = vmatprep.subr.bf16.mxu0 0
    %460 = vmatpush1.bf16.msra.mxu0 0
    %461 = vmatprep.subr.bf16.mxu0 0
    %462 = vmatpush1.bf16.msra.mxu0 0
    %463 = vmatprep.subr.bf16.mxu0 0
    %464 = vmatpush1.bf16.msra.mxu0 0
    %465 = vmatprep.subr.bf16.mxu0 0
    %466 = vmatpush1.bf16.msra.mxu0 0
    %467 = vmatprep.subr.bf16.mxu0 0
    %468 = vmatpush1.bf16.msra.mxu0 0
    %469 = vmatprep.subr.bf16.mxu0 0
    %470 = vmatpush1.bf16.msra.mxu0 0
    %471 = vmatprep.mubr.bf16.mxu0 0
    %472 = vmatmul.mubr.bf16.gmra.mrb[0].mxu0 %v437
    %v473 = vpop.f32.mrb[0].mxu0
    %v474 = vadd.f32 0.0, %v473
    %v475 = vpop.f32.mrb[0].mxu0
    %v476 = vadd.f32 0.0, %v475
    %v477 = vpop.f32.mrb[0].mxu0
    %v478 = vadd.f32 0.0, %v477
    %v479 = vpop.f32.mrb[0].mxu0
    %v480 = vadd.f32 0.0, %v479
    %481 = vdwg.mxu0
    %v482 = vadd.f32 %v418, %v474
    %v483 = vadd.f32 %v420, %v476
    %v484 = vadd.f32 %v422, %v478
    %v485 = vadd.f32 %v424, %v480
    %s486 = scalar_lea.vmem %s3, 16
    %v487 = vld [vmem:[%s486] sm:$0xff]
    %v488 = vld [vmem:[%s486 + $0x8] sm:$0xff]
    %490 = vset.pattern.permute.xlu0 0
    %491 = vperm.xlu0 %490, %v487
    %v492 = vpop.permute.xlu0 %491
    %495 = vset.pattern.permute.xlu0 0
    %496 = vperm.xlu0 %495, %v488
    %v497 = vpop.permute.xlu0 %496
    %v499 = vadd.f32 %v482, %v492
    %v500 = vadd.f32 %v483, %v492
    %v501 = vadd.f32 %v484, %v497
    %v502 = vadd.f32 %v485, %v497
    %v503 = vmax.f32 %v499, 0.0
    %v504 = vmax.f32 %v500, 0.0
    %v505 = vmax.f32 %v501, 0.0
    %v506 = vmax.f32 %v502, 0.0
    %v507 = vld [vmem:[%s4] sm:$0xf]
    %v508 = vld [vmem:[%s4 + $0x4] sm:$0xf]
    %v509 = vld [vmem:[%s5] sm:$0xff]
    %v510 = vld [vmem:[%s5 + $0x8] sm:$0xff]
    %512 = vset.pattern.permute.xlu0 0
    %513 = vperm.xlu0 %512, %v509
    %v514 = vpop.permute.xlu0 %513
    %517 = vset.pattern.permute.xlu0 0
    %518 = vperm.xlu0 %517, %v510
    %v519 = vpop.permute.xlu0 %518
    %v523 = vunpack.c.l.b16 %v507
    %v524 = vunpack.c.l.b16 %v508
    %v525 = vpack.c.b16 %v524, %v523
    %v527 = vsel %vm112, %v525, 0
    %529 = vmatprep.subr.bf16.mxu0 %v214
    %530 = vmatpush1.bf16.msra.mxu0 %v213
    %531 = vmatprep.subr.bf16.mxu0 0
    %532 = vmatpush1.bf16.msra.mxu0 0
    %533 = vmatprep.subr.bf16.mxu0 0
    %534 = vmatpush1.bf16.msra.mxu0 0
    %535 = vmatprep.subr.bf16.mxu0 0
    %536 = vmatpush1.bf16.msra.mxu0 0
    %537 = vmatprep.subr.bf16.mxu0 0
    %538 = vmatpush1.bf16.msra.mxu0 0
    %539 = vmatprep.subr.bf16.mxu0 0
    %540 = vmatpush1.bf16.msra.mxu0 0
    %541 = vmatprep.subr.bf16.mxu0 0
    %542 = vmatpush1.bf16.msra.mxu0 0
    %543 = vmatprep.subr.bf16.mxu0 0
    %544 = vmatpush1.bf16.msra.mxu0 0
    %545 = vmatprep.subr.bf16.mxu0 0
    %546 = vmatpush1.bf16.msra.mxu0 0
    %547 = vmatprep.subr.bf16.mxu0 0
    %548 = vmatpush1.bf16.msra.mxu0 0
    %549 = vmatprep.subr.bf16.mxu0 0
    %550 = vmatpush1.bf16.msra.mxu0 0
    %551 = vmatprep.subr.bf16.mxu0 0
    %552 = vmatpush1.bf16.msra.mxu0 0
    %553 = vmatprep.subr.bf16.mxu0 0
    %554 = vmatpush1.bf16.msra.mxu0 0
    %555 = vmatprep.subr.bf16.mxu0 0
    %556 = vmatpush1.bf16.msra.mxu0 0
    %557 = vmatprep.subr.bf16.mxu0 0
    %558 = vmatpush1.bf16.msra.mxu0 0
    %559 = vmatprep.subr.bf16.mxu0 0
    %560 = vmatpush1.bf16.msra.mxu0 0
    %561 = vmatprep.mubr.bf16.mxu0 0
    %562 = vmatmul.mubr.bf16.gmra.mrb[0].mxu0 %v527
    %v563 = vpop.f32.mrb[0].mxu0
    %v564 = vadd.f32 %v514, %v563
    %v565 = vpop.f32.mrb[0].mxu0
    %v566 = vadd.f32 %v514, %v565
    %v567 = vpop.f32.mrb[0].mxu0
    %v568 = vadd.f32 %v519, %v567
    %v569 = vpop.f32.mrb[0].mxu0
    %v570 = vadd.f32 %v519, %v569
    %571 = vdwg.mxu0
    %v572 = vadd.f32 %v503, %v564
    %v573 = vadd.f32 %v504, %v566
    %v574 = vadd.f32 %v505, %v568
    %v575 = vadd.f32 %v506, %v570
    %v576 = vmax.f32 %v572, 0.0
    %v577 = vmax.f32 %v573, 0.0
    %v578 = vmax.f32 %v574, 0.0
    %v579 = vmax.f32 %v575, 0.0
    %580 = vrot.lane.b32.xlu0 %v576, 4
    %v581 = vpop.permute.xlu0 %580
    %582 = vrot.lane.b32.xlu0 %v578, 4
    %v583 = vpop.permute.xlu0 %582
    %584 = vrot.lane.b32.xlu0 %v577, 4
    %v585 = vpop.permute.xlu0 %584
    %586 = vrot.lane.b32.xlu0 %v579, 4
    %v587 = vpop.permute.xlu0 %586
    %vm588 = vcmp.lt.s32.totalorder %v79, 4
    %v589 = vsel %vm588, %v581, %v585
    %v590 = vsel %vm588, %v583, %v587
    %v591 = vsel %vm588, %v585, %v581
    %v592 = vsel %vm588, %v587, %v583
    %s593 = scalar_lea.vmem %s2, 48
    %v594 = vld [vmem:[%s593] sm:$0xf]
    %v595 = vld [vmem:[%s593 + $0x4] sm:$0xf]
    %v596 = vpack.c.bf16 %v592, %v591
    %v597 = vpack.c.bf16 %v590, %v589
    %598 = vrot.lane.b32.xlu0 %v576, 2
    %v599 = vpop.permute.xlu0 %598
    %600 = vrot.lane.b32.xlu0 %v578, 2
    %v601 = vpop.permute.xlu0 %600
    %602 = vrot.lane.b32.xlu0 %v577, 2
    %v603 = vpop.permute.xlu0 %602
    %604 = vrot.lane.b32.xlu0 %v579, 2
    %v605 = vpop.permute.xlu0 %604
    %v606 = vsel %vm80, %v599, %v603
    %v607 = vsel %vm80, %v601, %v605
    %v608 = vsel %vm80, %v603, %v599
    %v609 = vsel %vm80, %v605, %v601
    %s610 = scalar_lea.vmem %s2, 56
    %v611 = vld [vmem:[%s610] sm:$0xf]
    %v612 = vld [vmem:[%s610 + $0x4] sm:$0xf]
    %v613 = vpack.c.bf16 %v609, %v608
    %v614 = vpack.c.bf16 %v607, %v606
    %v617 = vunpack.c.l.b16 %v611
    %v618 = vunpack.c.l.b16 %v612
    %v619 = vpack.c.b16 %v618, %v617
    %v621 = vsel %vm112, %v619, 0
    %623 = vmatprep.subr.bf16.mxu0 %v614
    %624 = vmatpush1.bf16.msra.mxu0 %v613
    %625 = vmatprep.subr.bf16.mxu0 0
    %626 = vmatpush1.bf16.msra.mxu0 0
    %627 = vmatprep.subr.bf16.mxu0 0
    %628 = vmatpush1.bf16.msra.mxu0 0
    %629 = vmatprep.subr.bf16.mxu0 0
    %630 = vmatpush1.bf16.msra.mxu0 0
    %631 = vmatprep.subr.bf16.mxu0 0
    %632 = vmatpush1.bf16.msra.mxu0 0
    %633 = vmatprep.subr.bf16.mxu0 0
    %634 = vmatpush1.bf16.msra.mxu0 0
    %635 = vmatprep.subr.bf16.mxu0 0
    %636 = vmatpush1.bf16.msra.mxu0 0
    %637 = vmatprep.subr.bf16.mxu0 0
    %638 = vmatpush1.bf16.msra.mxu0 0
    %639 = vmatprep.subr.bf16.mxu0 0
    %640 = vmatpush1.bf16.msra.mxu0 0
    %641 = vmatprep.subr.bf16.mxu0 0
    %642 = vmatpush1.bf16.msra.mxu0 0
    %643 = vmatprep.subr.bf16.mxu0 0
    %644 = vmatpush1.bf16.msra.mxu0 0
    %645 = vmatprep.subr.bf16.mxu0 0
    %646 = vmatpush1.bf16.msra.mxu0 0
    %647 = vmatprep.subr.bf16.mxu0 0
    %648 = vmatpush1.bf16.msra.mxu0 0
    %649 = vmatprep.subr.bf16.mxu0 0
    %650 = vmatpush1.bf16.msra.mxu0 0
    %651 = vmatprep.subr.bf16.mxu0 0
    %652 = vmatpush1.bf16.msra.mxu0 0
    %653 = vmatprep.subr.bf16.mxu0 0
    %654 = vmatpush1.bf16.msra.mxu0 0
    %655 = vmatprep.mubr.bf16.mxu0 0
    %656 = vmatmul.mubr.bf16.gmra.mrb[0].mxu0 %v621
    %v657 = vpop.f32.mrb[0].mxu0
    %v658 = vadd.f32 0.0, %v657
    %v659 = vpop.f32.mrb[0].mxu0
    %v660 = vadd.f32 0.0, %v659
    %v661 = vpop.f32.mrb[0].mxu0
    %v662 = vadd.f32 0.0, %v661
    %v663 = vpop.f32.mrb[0].mxu0
    %v664 = vadd.f32 0.0, %v663
    %665 = vdwg.mxu0
    %v668 = vunpack.c.l.b16 %v594
    %v669 = vunpack.c.l.b16 %v595
    %v670 = vpack.c.b16 %v669, %v668
    %v672 = vsel %vm112, %v670, 0
    %674 = vmatprep.subr.bf16.mxu0 %v597
    %675 = vmatpush1.bf16.msra.mxu0 %v596
    %676 = vmatprep.subr.bf16.mxu0 0
    %677 = vmatpush1.bf16.msra.mxu0 0
    %678 = vmatprep.subr.bf16.mxu0 0
    %679 = vmatpush1.bf16.msra.mxu0 0
    %680 = vmatprep.subr.bf16.mxu0 0
    %681 = vmatpush1.bf16.msra.mxu0 0
    %682 = vmatprep.subr.bf16.mxu0 0
    %683 = vmatpush1.bf16.msra.mxu0 0
    %684 = vmatprep.subr.bf16.mxu0 0
    %685 = vmatpush1.bf16.msra.mxu0 0
    %686 = vmatprep.subr.bf16.mxu0 0
    %687 = vmatpush1.bf16.msra.mxu0 0
    %688 = vmatprep.subr.bf16.mxu0 0
    %689 = vmatpush1.bf16.msra.mxu0 0
    %690 = vmatprep.subr.bf16.mxu0 0
    %691 = vmatpush1.bf16.msra.mxu0 0
    %692 = vmatprep.subr.bf16.mxu0 0
    %693 = vmatpush1.bf16.msra.mxu0 0
    %694 = vmatprep.subr.bf16.mxu0 0
    %695 = vmatpush1.bf16.msra.mxu0 0
    %696 = vmatprep.subr.bf16.mxu0 0
    %697 = vmatpush1.bf16.msra.mxu0 0
    %698 = vmatprep.subr.bf16.mxu0 0
    %699 = vmatpush1.bf16.msra.mxu0 0
    %700 = vmatprep.subr.bf16.mxu0 0
    %701 = vmatpush1.bf16.msra.mxu0 0
    %702 = vmatprep.subr.bf16.mxu0 0
    %703 = vmatpush1.bf16.msra.mxu0 0
    %704 = vmatprep.subr.bf16.mxu0 0
    %705 = vmatpush1.bf16.msra.mxu0 0
    %706 = vmatprep.mubr.bf16.mxu0 0
    %707 = vmatmul.mubr.bf16.gmra.mrb[0].mxu0 %v672
    %v708 = vpop.f32.mrb[0].mxu0
    %v709 = vadd.f32 %v658, %v708
    %v710 = vpop.f32.mrb[0].mxu0
    %v711 = vadd.f32 %v660, %v710
    %v712 = vpop.f32.mrb[0].mxu0
    %v713 = vadd.f32 %v662, %v712
    %v714 = vpop.f32.mrb[0].mxu0
    %v715 = vadd.f32 %v664, %v714
    %716 = vdwg.mxu0
    %s717 = scalar_lea.vmem %s2, 64
    %v718 = vld [vmem:[%s717] sm:$0xf]
    %v719 = vld [vmem:[%s717 + $0x4] sm:$0xf]
    %v720 = vpack.c.bf16 %v578, %v576
    %v721 = vpack.c.bf16 %v579, %v577
    %v724 = vunpack.c.l.b16 %v718
    %v725 = vunpack.c.l.b16 %v719
    %v726 = vpack.c.b16 %v725, %v724
    %v728 = vsel %vm112, %v726, 0
    %730 = vmatprep.subr.bf16.mxu0 %v721
    %731 = vmatpush1.bf16.msra.mxu0 %v720
    %732 = vmatprep.subr.bf16.mxu0 0
    %733 = vmatpush1.bf16.msra.mxu0 0
    %734 = vmatprep.subr.bf16.mxu0 0
    %735 = vmatpush1.bf16.msra.mxu0 0
    %736 = vmatprep.subr.bf16.mxu0 0
    %737 = vmatpush1.bf16.msra.mxu0 0
    %738 = vmatprep.subr.bf16.mxu0 0
    %739 = vmatpush1.bf16.msra.mxu0 0
    %740 = vmatprep.subr.bf16.mxu0 0
    %741 = vmatpush1.bf16.msra.mxu0 0
    %742 = vmatprep.subr.bf16.mxu0 0
    %743 = vmatpush1.bf16.msra.mxu0 0
    %744 = vmatprep.subr.bf16.mxu0 0
    %745 = vmatpush1.bf16.msra.mxu0 0
    %746 = vmatprep.subr.bf16.mxu0 0
    %747 = vmatpush1.bf16.msra.mxu0 0
    %748 = vmatprep.subr.bf16.mxu0 0
    %749 = vmatpush1.bf16.msra.mxu0 0
    %750 = vmatprep.subr.bf16.mxu0 0
    %751 = vmatpush1.bf16.msra.mxu0 0
    %752 = vmatprep.subr.bf16.mxu0 0
    %753 = vmatpush1.bf16.msra.mxu0 0
    %754 = vmatprep.subr.bf16.mxu0 0
    %755 = vmatpush1.bf16.msra.mxu0 0
    %756 = vmatprep.subr.bf16.mxu0 0
    %757 = vmatpush1.bf16.msra.mxu0 0
    %758 = vmatprep.subr.bf16.mxu0 0
    %759 = vmatpush1.bf16.msra.mxu0 0
    %760 = vmatprep.subr.bf16.mxu0 0
    %761 = vmatpush1.bf16.msra.mxu0 0
    %762 = vmatprep.mubr.bf16.mxu0 0
    %763 = vmatmul.mubr.bf16.gmra.mrb[0].mxu0 %v728
    %v764 = vpop.f32.mrb[0].mxu0
    %v765 = vadd.f32 0.0, %v764
    %v766 = vpop.f32.mrb[0].mxu0
    %v767 = vadd.f32 0.0, %v766
    %v768 = vpop.f32.mrb[0].mxu0
    %v769 = vadd.f32 0.0, %v768
    %v770 = vpop.f32.mrb[0].mxu0
    %v771 = vadd.f32 0.0, %v770
    %772 = vdwg.mxu0
    %v773 = vadd.f32 %v709, %v765
    %v774 = vadd.f32 %v711, %v767
    %v775 = vadd.f32 %v713, %v769
    %v776 = vadd.f32 %v715, %v771
    %s777 = scalar_lea.vmem %s3, 32
    %v778 = vld [vmem:[%s777] sm:$0xff]
    %v779 = vld [vmem:[%s777 + $0x8] sm:$0xff]
    %781 = vset.pattern.permute.xlu0 0
    %782 = vperm.xlu0 %781, %v778
    %v783 = vpop.permute.xlu0 %782
    %786 = vset.pattern.permute.xlu0 0
    %787 = vperm.xlu0 %786, %v779
    %v788 = vpop.permute.xlu0 %787
    %v790 = vadd.f32 %v773, %v783
    %v791 = vadd.f32 %v774, %v783
    %v792 = vadd.f32 %v775, %v788
    %v793 = vadd.f32 %v776, %v788
    %v794 = vmax.f32 %v790, 0.0
    %v795 = vmax.f32 %v791, 0.0
    %v796 = vmax.f32 %v792, 0.0
    %v797 = vmax.f32 %v793, 0.0
    %798 = vrot.lane.b32.xlu0 %v794, 4
    %v799 = vpop.permute.xlu0 %798
    %800 = vrot.lane.b32.xlu0 %v796, 4
    %v801 = vpop.permute.xlu0 %800
    %802 = vrot.lane.b32.xlu0 %v795, 4
    %v803 = vpop.permute.xlu0 %802
    %804 = vrot.lane.b32.xlu0 %v797, 4
    %v805 = vpop.permute.xlu0 %804
    %v806 = vsel %vm588, %v799, %v803
    %v807 = vsel %vm588, %v801, %v805
    %v808 = vsel %vm588, %v803, %v799
    %v809 = vsel %vm588, %v805, %v801
    %s810 = scalar_lea.vmem %s2, 72
    %v811 = vld [vmem:[%s810] sm:$0xf]
    %v812 = vld [vmem:[%s810 + $0x4] sm:$0xf]
    %v813 = vpack.c.bf16 %v809, %v808
    %v814 = vpack.c.bf16 %v807, %v806
    %815 = vrot.lane.b32.xlu0 %v794, 2
    %v816 = vpop.permute.xlu0 %815
    %817 = vrot.lane.b32.xlu0 %v796, 2
    %v818 = vpop.permute.xlu0 %817
    %819 = vrot.lane.b32.xlu0 %v795, 2
    %v820 = vpop.permute.xlu0 %819
    %821 = vrot.lane.b32.xlu0 %v797, 2
    %v822 = vpop.permute.xlu0 %821
    %v823 = vsel %vm80, %v816, %v820
    %v824 = vsel %vm80, %v818, %v822
    %v825 = vsel %vm80, %v820, %v816
    %v826 = vsel %vm80, %v822, %v818
    %s827 = scalar_lea.vmem %s2, 80
    %v828 = vld [vmem:[%s827] sm:$0xf]
    %v829 = vld [vmem:[%s827 + $0x4] sm:$0xf]
    %v830 = vpack.c.bf16 %v826, %v825
    %v831 = vpack.c.bf16 %v824, %v823
    %v834 = vunpack.c.l.b16 %v828
    %v835 = vunpack.c.l.b16 %v829
    %v836 = vpack.c.b16 %v835, %v834
    %v838 = vsel %vm112, %v836, 0
    %840 = vmatprep.subr.bf16.mxu0 %v831
    %841 = vmatpush1.bf16.msra.mxu0 %v830
    %842 = vmatprep.subr.bf16.mxu0 0
    %843 = vmatpush1.bf16.msra.mxu0 0
    %844 = vmatprep.subr.bf16.mxu0 0
    %845 = vmatpush1.bf16.msra.mxu0 0
    %846 = vmatprep.subr.bf16.mxu0 0
    %847 = vmatpush1.bf16.msra.mxu0 0
    %848 = vmatprep.subr.bf16.mxu0 0
    %849 = vmatpush1.bf16.msra.mxu0 0
    %850 = vmatprep.subr.bf16.mxu0 0
    %851 = vmatpush1.bf16.msra.mxu0 0
    %852 = vmatprep.subr.bf16.mxu0 0
    %853 = vmatpush1.bf16.msra.mxu0 0
    %854 = vmatprep.subr.bf16.mxu0 0
    %855 = vmatpush1.bf16.msra.mxu0 0
    %856 = vmatprep.subr.bf16.mxu0 0
    %857 = vmatpush1.bf16.msra.mxu0 0
    %858 = vmatprep.subr.bf16.mxu0 0
    %859 = vmatpush1.bf16.msra.mxu0 0
    %860 = vmatprep.subr.bf16.mxu0 0
    %861 = vmatpush1.bf16.msra.mxu0 0
    %862 = vmatprep.subr.bf16.mxu0 0
    %863 = vmatpush1.bf16.msra.mxu0 0
    %864 = vmatprep.subr.bf16.mxu0 0
    %865 = vmatpush1.bf16.msra.mxu0 0
    %866 = vmatprep.subr.bf16.mxu0 0
    %867 = vmatpush1.bf16.msra.mxu0 0
    %868 = vmatprep.subr.bf16.mxu0 0
    %869 = vmatpush1.bf16.msra.mxu0 0
    %870 = vmatprep.subr.bf16.mxu0 0
    %871 = vmatpush1.bf16.msra.mxu0 0
    %872 = vmatprep.mubr.bf16.mxu0 0
    %873 = vmatmul.mubr.bf16.gmra.mrb[0].mxu0 %v838
    %v874 = vpop.f32.mrb[0].mxu0
    %v875 = vpop.f32.mrb[0].mxu0
    %v876 = vadd.f32 0.0, %v875
    %v877 = vpop.f32.mrb[0].mxu0
    %v878 = vpop.f32.mrb[0].mxu0
    %v879 = vadd.f32 0.0, %v878
    %880 = vdwg.mxu0
    %v883 = vunpack.c.l.b16 %v811
    %v884 = vunpack.c.l.b16 %v812
    %v885 = vpack.c.b16 %v884, %v883
    %v887 = vsel %vm112, %v885, 0
    %889 = vmatprep.subr.bf16.mxu0 %v814
    %890 = vmatpush1.bf16.msra.mxu0 %v813
    %891 = vmatprep.subr.bf16.mxu0 0
    %892 = vmatpush1.bf16.msra.mxu0 0
    %893 = vmatprep.subr.bf16.mxu0 0
    %894 = vmatpush1.bf16.msra.mxu0 0
    %895 = vmatprep.subr.bf16.mxu0 0
    %896 = vmatpush1.bf16.msra.mxu0 0
    %897 = vmatprep.subr.bf16.mxu0 0
    %898 = vmatpush1.bf16.msra.mxu0 0
    %899 = vmatprep.subr.bf16.mxu0 0
    %900 = vmatpush1.bf16.msra.mxu0 0
    %901 = vmatprep.subr.bf16.mxu0 0
    %902 = vmatpush1.bf16.msra.mxu0 0
    %903 = vmatprep.subr.bf16.mxu0 0
    %904 = vmatpush1.bf16.msra.mxu0 0
    %905 = vmatprep.subr.bf16.mxu0 0
    %906 = vmatpush1.bf16.msra.mxu0 0
    %907 = vmatprep.subr.bf16.mxu0 0
    %908 = vmatpush1.bf16.msra.mxu0 0
    %909 = vmatprep.subr.bf16.mxu0 0
    %910 = vmatpush1.bf16.msra.mxu0 0
    %911 = vmatprep.subr.bf16.mxu0 0
    %912 = vmatpush1.bf16.msra.mxu0 0
    %913 = vmatprep.subr.bf16.mxu0 0
    %914 = vmatpush1.bf16.msra.mxu0 0
    %915 = vmatprep.subr.bf16.mxu0 0
    %916 = vmatpush1.bf16.msra.mxu0 0
    %917 = vmatprep.subr.bf16.mxu0 0
    %918 = vmatpush1.bf16.msra.mxu0 0
    %919 = vmatprep.subr.bf16.mxu0 0
    %920 = vmatpush1.bf16.msra.mxu0 0
    %921 = vmatprep.mubr.bf16.mxu0 0
    %922 = vmatmul.mubr.bf16.gmra.mrb[0].mxu0 %v887
    %v923 = vpop.f32.mrb[0].mxu0
    %v924 = vpop.f32.mrb[0].mxu0
    %v925 = vadd.f32 %v876, %v924
    %v926 = vpop.f32.mrb[0].mxu0
    %v927 = vpop.f32.mrb[0].mxu0
    %v928 = vadd.f32 %v879, %v927
    %929 = vdwg.mxu0
    %s930 = scalar_lea.vmem %s2, 88
    %v931 = vld [vmem:[%s930] sm:$0xf]
    %v932 = vld [vmem:[%s930 + $0x4] sm:$0xf]
    %v933 = vpack.c.bf16 %v796, %v794
    %v934 = vpack.c.bf16 %v797, %v795
    %v937 = vunpack.c.l.b16 %v931
    %v938 = vunpack.c.l.b16 %v932
    %v939 = vpack.c.b16 %v938, %v937
    %v941 = vsel %vm112, %v939, 0
    %943 = vmatprep.subr.bf16.mxu0 %v934
    %944 = vmatpush1.bf16.msra.mxu0 %v933
    %945 = vmatprep.subr.bf16.mxu0 0
    %946 = vmatpush1.bf16.msra.mxu0 0
    %947 = vmatprep.subr.bf16.mxu0 0
    %948 = vmatpush1.bf16.msra.mxu0 0
    %949 = vmatprep.subr.bf16.mxu0 0
    %950 = vmatpush1.bf16.msra.mxu0 0
    %951 = vmatprep.subr.bf16.mxu0 0
    %952 = vmatpush1.bf16.msra.mxu0 0
    %953 = vmatprep.subr.bf16.mxu0 0
    %954 = vmatpush1.bf16.msra.mxu0 0
    %955 = vmatprep.subr.bf16.mxu0 0
    %956 = vmatpush1.bf16.msra.mxu0 0
    %957 = vmatprep.subr.bf16.mxu0 0
    %958 = vmatpush1.bf16.msra.mxu0 0
    %959 = vmatprep.subr.bf16.mxu0 0
    %960 = vmatpush1.bf16.msra.mxu0 0
    %961 = vmatprep.subr.bf16.mxu0 0
    %962 = vmatpush1.bf16.msra.mxu0 0
    %963 = vmatprep.subr.bf16.mxu0 0
    %964 = vmatpush1.bf16.msra.mxu0 0
    %965 = vmatprep.subr.bf16.mxu0 0
    %966 = vmatpush1.bf16.msra.mxu0 0
    %967 = vmatprep.subr.bf16.mxu0 0
    %968 = vmatpush1.bf16.msra.mxu0 0
    %969 = vmatprep.subr.bf16.mxu0 0
    %970 = vmatpush1.bf16.msra.mxu0 0
    %971 = vmatprep.subr.bf16.mxu0 0
    %972 = vmatpush1.bf16.msra.mxu0 0
    %973 = vmatprep.subr.bf16.mxu0 0
    %974 = vmatpush1.bf16.msra.mxu0 0
    %975 = vmatprep.mubr.bf16.mxu0 0
    %976 = vmatmul.mubr.bf16.gmra.mrb[0].mxu0 %v941
    %v977 = vpop.f32.mrb[0].mxu0
    %v978 = vpop.f32.mrb[0].mxu0
    %v979 = vadd.f32 0.0, %v978
    %v980 = vpop.f32.mrb[0].mxu0
    %v981 = vpop.f32.mrb[0].mxu0
    %v982 = vadd.f32 0.0, %v981
    %983 = vdwg.mxu0
    %v984 = vadd.f32 %v925, %v979
    %v985 = vadd.f32 %v928, %v982
    %s986 = scalar_lea.vmem %s3, 48
    %v987 = vld [vmem:[%s986] sm:$0xff]
    %v988 = vld [vmem:[%s986 + $0x8] sm:$0xff]
    %990 = vset.pattern.permute.xlu0 0
    %991 = vperm.xlu0 %990, %v987
    %v992 = vpop.permute.xlu0 %991
    %995 = vset.pattern.permute.xlu0 0
    %996 = vperm.xlu0 %995, %v988
    %v997 = vpop.permute.xlu0 %996
    %v999 = vadd.f32 %v984, %v992
    %v1000 = vadd.f32 %v985, %v997
    %v1001 = vmax.f32 %v999, 0.0
    %v1002 = vmax.f32 %v1000, 0.0
    %v1003 = vadd.f32 %v1001, %v577
    %v1004 = vadd.f32 %v1002, %v579
    %v1005 = vmax.f32 %v1003, 0.0
    %v1006 = vmax.f32 %v1004, 0.0
    %1007 = vst [vmem:[#allocation8] sm:$0xff] %v1005
    %1008 = vst [vmem:[#allocation8 + $0x8] sm:$0xff] %v1006
    %v1009 = vld [vmem:[%s6] sm:$0xf]
    %v1010 = vld [vmem:[%s6 + $0x4] sm:$0xf]
    %v1011 = vpack.c.bf16 %v1006, %v1005
    %v1012 = vld [vmem:[%s7] sm:$0xff]
    %v1013 = vld [vmem:[%s7 + $0x8] sm:$0xff]
    %1015 = vset.pattern.permute.xlu0 0
    %1016 = vperm.xlu0 %1015, %v1012
    %v1017 = vpop.permute.xlu0 %1016
    %1020 = vset.pattern.permute.xlu0 0
    %1021 = vperm.xlu0 %1020, %v1013
    %v1022 = vpop.permute.xlu0 %1021
    %v1026 = vunpack.c.l.b16 %v1009
    %v1027 = vunpack.c.l.b16 %v1010
    %v1028 = vpack.c.b16 %v1027, %v1026
    %v1030 = vsel %vm112, %v1028, 0
    %1032 = vmatprep.subr.bf16.mxu0 0
    %1033 = vmatpush1.bf16.msra.mxu0 %v1011
    %1034 = vmatprep.subr.bf16.mxu0 0
    %1035 = vmatpush1.bf16.msra.mxu0 0
    %1036 = vmatprep.subr.bf16.mxu0 0
    %1037 = vmatpush1.bf16.msra.mxu0 0
    %1038 = vmatprep.subr.bf16.mxu0 0
    %1039 = vmatpush1.bf16.msra.mxu0 0
    %1040 = vmatprep.subr.bf16.mxu0 0
    %1041 = vmatpush1.bf16.msra.mxu0 0
    %1042 = vmatprep.subr.bf16.mxu0 0
    %1043 = vmatpush1.bf16.msra.mxu0 0
    %1044 = vmatprep.subr.bf16.mxu0 0
    %1045 = vmatpush1.bf16.msra.mxu0 0
    %1046 = vmatprep.subr.bf16.mxu0 0
    %1047 = vmatpush1.bf16.msra.mxu0 0
    %1048 = vmatprep.subr.bf16.mxu0 0
    %1049 = vmatpush1.bf16.msra.mxu0 0
    %1050 = vmatprep.subr.bf16.mxu0 0
    %1051 = vmatpush1.bf16.msra.mxu0 0
    %1052 = vmatprep.subr.bf16.mxu0 0
    %1053 = vmatpush1.bf16.msra.mxu0 0
    %1054 = vmatprep.subr.bf16.mxu0 0
    %1055 = vmatpush1.bf16.msra.mxu0 0
    %1056 = vmatprep.subr.bf16.mxu0 0
    %1057 = vmatpush1.bf16.msra.mxu0 0
    %1058 = vmatprep.subr.bf16.mxu0 0
    %1059 = vmatpush1.bf16.msra.mxu0 0
    %1060 = vmatprep.subr.bf16.mxu0 0
    %1061 = vmatpush1.bf16.msra.mxu0 0
    %1062 = vmatprep.subr.bf16.mxu0 0
    %1063 = vmatpush1.bf16.msra.mxu0 0
    %1064 = vmatprep.mubr.bf16.mxu0 0
    %1065 = vmatmul.mubr.bf16.gmra.mrb[0].mxu0 %v1030
    %v1066 = vpop.f32.mrb[0].mxu0
    %v1067 = vadd.f32 %v1017, %v1066
    %v1068 = vpop.f32.mrb[0].mxu0
    %v1069 = vpop.f32.mrb[0].mxu0
    %v1070 = vadd.f32 %v1022, %v1069
    %v1071 = vpop.f32.mrb[0].mxu0
    %1072 = vdwg.mxu0
    %1073 = vst [vmem:[#allocation7] sm:$0xff] %v1067
    %1074 = vst [vmem:[#allocation7 + $0x8] sm:$0xff] %v1070
    // Predicated region
    $region42: #{tpu_custom_call.1} parent=1 // pred_check
      _
    $region43: #{tpu_custom_call.1} parent=1 // pred_check_branch
      %1076 = sbr.rel (0) target = $region45
    $region44: #{tpu_custom_call.1} parent=1 // pred_region
      %s1078 = ssub.s32 256, 256
      %1079 = vsyncadd [#allocation4], %s1078
      %s1080 = sshll.u32 [#allocation7], 4
      %s1081 = int_to_ptr.vmem [resolvable:$true] %s1080
      %1086 = dma.vmem_to_hbm [thread:$0]  %s1081, 256, %s8, [#allocation4], 128, 128, 8
    $region45: #{tpu_custom_call.1} parent=1 // pred_fallthru
      _
    // Predicated region
    $region46: #{tpu_custom_call.1} parent=1 // pred_check
      _
    $region47: #{tpu_custom_call.1} parent=1 // pred_check_branch
      %1088 = sbr.rel (0) target = $region49
    $region48: #{tpu_custom_call.1} parent=1 // pred_region
      %s1090 = ssub.s32 256, 256
      %1091 = vsyncadd [#allocation9], %s1090
      %s1092 = sshll.u32 [#allocation8], 4
      %s1093 = int_to_ptr.vmem [resolvable:$true] %s1092
      %1098 = dma.vmem_to_hbm [thread:$0]  %s1093, 256, %s9, [#allocation9], 128, 128, 8
    $region49: #{tpu_custom_call.1} parent=1 // pred_fallthru
      _
    // Predicated region
    $region50: #{tpu_custom_call.1} parent=1 // pred_check
      _
    $region51: #{tpu_custom_call.1} parent=1 // pred_check_branch
      %1100 = sbr.rel (0) target = $region53
    $region52: #{tpu_custom_call.1} parent=1 // pred_region
      %1101 = dma.done [#allocation4], 256
    $region53: #{tpu_custom_call.1} parent=1 // pred_fallthru
      _
    // Predicated region
    $region54: #{tpu_custom_call.1} parent=1 // pred_check
      _
    $region55: #{tpu_custom_call.1} parent=1 // pred_check_branch
      %1103 = sbr.rel (0) target = $region57
    $region56: #{tpu_custom_call.1} parent=1 // pred_region
      %1104 = dma.done [#allocation9], 256
    $region57: #{tpu_custom_call.1} parent=1 // pred_fallthru
      _
    %1105 = vsyncpa [#allocation3], 1
    %1106 = vsyncpa [#allocation6], 1
    %1107 = vsyncpa [#allocation4], 1
    %1108 = vsyncpa [#allocation9], 1

</llo_original>
